<compile_context>
chip_gen: v7x
topology: tpu7x:2x2x1
jax: 0.10.0
libtpu: 0.0.40
codegen_flags: <defaults>
</compile_context>

<pallas_src>
import math

import jax
import jax.numpy as jnp
from jax import lax
from jax.experimental import pallas as pl
from jax.experimental.pallas import tpu as pltpu  # noqa: F401  (defaults suffice for one un-gridded call)

# ----------------------------------------------------------------------------
# Small synthetic config (mirrors the repo's `config` object)
# ----------------------------------------------------------------------------
B = 2                        # batch
H_CFG, W_CFG = 4, 4          # config.H, config.W
S = H_CFG * W_CFG            # sequence length = 16
D_MODEL = 32                 # config.d_model
N_HEADS = 2                  # config.n_heads
HIDDEN = 64                  # config.hidden
DIM_K = D_MODEL // N_HEADS   # Decoder: dim_k = dim_fea // n_heads = 16
DIM_V = DIM_K                # 16
HEAD_DIM = DIM_K // N_HEADS  # per-head chunk used by the torch reshape = 8
N_GROUPS = N_HEADS * B       # merged (head, batch) leading dims of torch reshape = 4
GROUP_ROWS = (B * S) // N_GROUPS       # rows of the flat (B*S, .) projections per group = 8
NORM_FACT = 1.0 / math.sqrt(D_MODEL)   # torch: 1 / sqrt(d_model)
EPS = 1e-5

# dot_general dimension numbers for "A @ B^T" (contract last dims of both).
_DN_QKT = (((1,), (1,)), ((), ()))


# ----------------------------------------------------------------------------
# In-kernel helpers
# ----------------------------------------------------------------------------
def _gelu(x):
    # Repo's custom GELU class: BERT-style tanh approximation.
    # TODO(synk): repo GELU source not shown; if it is erf-based results differ ~1e-3.
    return 0.5 * x * (1.0 + jnp.tanh(0.7978845608028654 * (x + 0.044715 * x * x * x)))


def _layernorm_seq_feat(t3):
    """nn.LayerNorm(x.size()[1:]) built fresh each forward (weight=1, bias=0):
    normalize jointly over (S, D) per batch element, eps=1e-5."""
    inv_n = 1.0 / (S * D_MODEL)
    mu = jnp.sum(jnp.sum(t3, axis=2, keepdims=True), axis=1, keepdims=True) * inv_n
    d = t3 - mu
    var = jnp.sum(jnp.sum(d * d, axis=2, keepdims=True), axis=1, keepdims=True) * inv_n
    return d * lax.rsqrt(var + EPS)          # rsqrt -> EUP


# ----------------------------------------------------------------------------
# Single fused kernel
# ----------------------------------------------------------------------------
def _cross_modal_kernel(x_ref, y_ref, wq_ref, bq_ref, wkv_ref, bkv_ref,
                        wo_ref, bo_ref, w1_ref, b1_ref, w2_ref, b2_ref,
                        out_ref):
    x3 = x_ref[...]                        # (B, S, D)  target == attention `x` / residual `v`
    y3 = y_ref[...]                        # (B, S, D)  f1     == attention `y` (keys / values)
    # leading-dim merges only (layout preserving)
    x2d = x3.reshape(B * S, D_MODEL)
    y2d = y3.reshape(B * S, D_MODEL)

    # ---- fused projections: Q from x, [K | V] from y (one matmul each) ----
    q2d = jnp.dot(x2d, wq_ref[...], preferred_element_type=jnp.float32) + bq_ref[...]    # (B*S, 16)
    kv = jnp.dot(y2d, wkv_ref[...], preferred_element_type=jnp.float32) + bkv_ref[...]   # (B*S, 32)

    # channel halves (8-aligned lane slices) — the two "d" chunks that the torch
    # reshape interleaves with the sequence axis.
    q_l, q_r = q2d[:, :HEAD_DIM], q2d[:, HEAD_DIM:DIM_K]
    k_l, k_r = kv[:, :HEAD_DIM], kv[:, HEAD_DIM:DIM_K]
    v_l, v_r = kv[:, DIM_K:DIM_K + HEAD_DIM], kv[:, DIM_K + HEAD_DIM:]

    # ---- attention, unrolled over the 4 torch groups (= merged (head, batch)) ----
    # The torch reshape maps group n to rows [8n, 8n+8) of the flat projections,
    # its 16 in-group positions being the interleave of (seq, channel-half).
    # We work on a row-PERMUTED (de-interleaved) version of each group's (16, 8)
    # Q/K/V tiles; softmax and the value contraction are invariant to a
    # consistent key permutation, and the query permutation is undone for free
    # by routing the two result halves through the two halves of W_o below.
    ctx_l_parts, ctx_r_parts = [], []
    for n in range(N_GROUPS):
        r0, r1 = n * GROUP_ROWS, (n + 1) * GROUP_ROWS
        qg = jnp.concatenate([q_l[r0:r1], q_r[r0:r1]], axis=0)   # (16, 8)
        kg = jnp.concatenate([k_l[r0:r1], k_r[r0:r1]], axis=0)   # (16, 8)
        vg = jnp.concatenate([v_l[r0:r1], v_r[r0:r1]], axis=0)   # (16, 8)

        s = lax.dot_general(qg, kg, _DN_QKT,
                            preferred_element_type=jnp.float32) * NORM_FACT   # (16, 16)
        # torch builds a mean-threshold mask but uses the NON-inplace
        # masked_fill and discards the result -> mask is a no-op; skipped.
        s = s - jnp.max(s, axis=-1, keepdims=True)
        p = jnp.exp(s)
        p = p * pl.reciprocal(jnp.sum(p, axis=-1, keepdims=True), approx=True)
        c = jnp.dot(p, vg, preferred_element_type=jnp.float32)                # (16, 8)
        ctx_l_parts.append(c[:GROUP_ROWS])   # even in-group positions -> ctx channels 0..7
        ctx_r_parts.append(c[GROUP_ROWS:])   # odd  in-group positions -> ctx channels 8..15
    ctx_l = jnp.concatenate(ctx_l_parts, axis=0)   # (B*S, 8)
    ctx_r = jnp.concatenate(ctx_r_parts, axis=0)   # (B*S, 8)

    # ---- output projection: splitting W_o by rows undoes the channel interleave ----
    wo = wo_ref[...]                                               # (dim_v=16, D)
    mha = (jnp.dot(ctx_l, wo[:HEAD_DIM], preferred_element_type=jnp.float32) +
           jnp.dot(ctx_r, wo[HEAD_DIM:], preferred_element_type=jnp.float32) +
           bo_ref[...])                                            # (B*S, D)

    # ---- Add&Norm #1 (nn.Dropout == identity in eval) ----
    x1 = _layernorm_seq_feat(x3 + mha.reshape(B, S, D_MODEL))

    # ---- Feed_Forward1 + Add&Norm #2 ----
    h = jnp.dot(x1.reshape(B * S, D_MODEL), w1_ref[...],
                preferred_element_type=jnp.float32) + b1_ref[...]              # (B*S, HIDDEN)
    ff = jnp.dot(_gelu(h), w2_ref[...],
                 preferred_element_type=jnp.float32) + b2_ref[...]             # (B*S, D)
    x2 = _layernorm_seq_feat(x1 + ff.reshape(B, S, D_MODEL))

    # ---- Decoder.forward: output = x2 + v ----
    out_ref[...] = x2 + x3


# ----------------------------------------------------------------------------
# Parameters (torch.nn.Linear-style uniform fan-in init; weights stored (in, out))
# ----------------------------------------------------------------------------
def _init_linear(key, fan_in, fan_out):
    kw, kb = jax.random.split(key)
    lim = 1.0 / math.sqrt(fan_in)
    w = jax.random.uniform(kw, (fan_in, fan_out), jnp.float32, -lim, lim)
    b = jax.random.uniform(kb, (1, fan_out), jnp.float32, -lim, lim)
    return w, b


def init_params(key):
    ks = jax.random.split(key, 6)
    wq, bq = _init_linear(ks[0], D_MODEL, DIM_K)
    wk, bk = _init_linear(ks[1], D_MODEL, DIM_K)
    wv, bv = _init_linear(ks[2], D_MODEL, DIM_V)
    wo, bo = _init_linear(ks[3], DIM_V, D_MODEL)
    w1, b1 = _init_linear(ks[4], D_MODEL, HIDDEN)
    w2, b2 = _init_linear(ks[5], HIDDEN, D_MODEL)
    # fuse the K and V projections into a single matmul (split in-kernel)
    wkv = jnp.concatenate([wk, wv], axis=1)    # (D, 2*dim_k)
    bkv = jnp.concatenate([bk, bv], axis=1)    # (1, 2*dim_k)
    return dict(wq=wq, bq=bq, wkv=wkv, bkv=bkv, wo=wo, bo=bo,
                w1=w1, b1=b1, w2=w2, b2=b2)


# ----------------------------------------------------------------------------
# Forward pass: one fused, un-gridded pallas_call (whole problem fits in VMEM)
# ----------------------------------------------------------------------------
@jax.jit
def cross_modal_forward(target, f1, params):
    # Cross_modal.forward(target, f1) == Decoder(cross1)(q=f1, v=target):
    # MHA queries come from `target`, keys/values from `f1`.
    return pl.pallas_call(
        _cross_modal_kernel,
        out_shape=jax.ShapeDtypeStruct((B, S, D_MODEL), jnp.float32),
    )(target, f1,
      params['wq'], params['bq'], params['wkv'], params['bkv'],
      params['wo'], params['bo'], params['w1'], params['b1'],
      params['w2'], params['b2'])


if __name__ == "__main__":
    key = jax.random.PRNGKey(0)
    k_t, k_f, k_p = jax.random.split(key, 3)
    target = jax.random.normal(k_t, (B, S, D_MODEL), dtype=jnp.float32)
    f1 = jax.random.normal(k_f, (B, S, D_MODEL), dtype=jnp.float32)
    params = init_params(k_p)

    out = cross_modal_forward(target, f1, params)
    out = jax.block_until_ready(out)
    assert out.shape == (B, S, D_MODEL), out.shape
    assert bool(jnp.all(jnp.isfinite(out)))
    print("KERNEL_OK")
</pallas_src>

<mosaic_0001>
module attributes {stable_mosaic.version = 11 : i64} {
  func.func @_cross_modal_kernel(%arg0: memref<2x16x32xf32, #tpu.memory_space<vmem>>, %arg1: memref<2x16x32xf32, #tpu.memory_space<vmem>>, %arg2: memref<32x16xf32, #tpu.memory_space<vmem>>, %arg3: memref<1x16xf32, #tpu.memory_space<vmem>>, %arg4: memref<32x32xf32, #tpu.memory_space<vmem>>, %arg5: memref<1x32xf32, #tpu.memory_space<vmem>>, %arg6: memref<16x32xf32, #tpu.memory_space<vmem>>, %arg7: memref<1x32xf32, #tpu.memory_space<vmem>>, %arg8: memref<32x64xf32, #tpu.memory_space<vmem>>, %arg9: memref<1x64xf32, #tpu.memory_space<vmem>>, %arg10: memref<64x32xf32, #tpu.memory_space<vmem>>, %arg11: memref<1x32xf32, #tpu.memory_space<vmem>>, %arg12: memref<2x16x32xf32, #tpu.memory_space<vmem>>) attributes {dimension_semantics = [], scalar_prefetch = 0 : i64, scratch_operands = 0 : i64, tpu.core_type = #tpu.core_type<tc>} {
    %c0 = arith.constant 0 : index
    %c0_0 = arith.constant 0 : index
    %c0_1 = arith.constant 0 : index
    %0 = vector.load %arg0[%c0, %c0_0, %c0_1] : memref<2x16x32xf32, #tpu.memory_space<vmem>>, vector<2x16x32xf32>
    %c0_2 = arith.constant 0 : index
    %c0_3 = arith.constant 0 : index
    %c0_4 = arith.constant 0 : index
    %1 = vector.load %arg1[%c0_2, %c0_3, %c0_4] : memref<2x16x32xf32, #tpu.memory_space<vmem>>, vector<2x16x32xf32>
    %2 = vector.shape_cast %0 : vector<2x16x32xf32> to vector<32x32xf32>
    %3 = vector.shape_cast %1 : vector<2x16x32xf32> to vector<32x32xf32>
    %c0_5 = arith.constant 0 : index
    %c0_6 = arith.constant 0 : index
    %4 = vector.load %arg2[%c0_5, %c0_6] : memref<32x16xf32, #tpu.memory_space<vmem>>, vector<32x16xf32>
    %cst = arith.constant dense<0.000000e+00> : vector<32x16xf32>
    %5 = tpu.matmul %2, %4, %cst {dimension_numbers = #tpu.dot_dimension_numbers<[1], [0], [0], [1], [0, 0, 1, 1], [], []>} : vector<32x32xf32>, vector<32x16xf32>, vector<32x16xf32> -> vector<32x16xf32>
    %c0_7 = arith.constant 0 : index
    %c0_8 = arith.constant 0 : index
    %6 = vector.load %arg3[%c0_7, %c0_8] : memref<1x16xf32, #tpu.memory_space<vmem>>, vector<1x16xf32>
    %7 = vector.broadcast %6 : vector<1x16xf32> to vector<32x16xf32>
    %8 = arith.addf %5, %7 : vector<32x16xf32>
    %c0_9 = arith.constant 0 : index
    %c0_10 = arith.constant 0 : index
    %9 = vector.load %arg4[%c0_9, %c0_10] : memref<32x32xf32, #tpu.memory_space<vmem>>, vector<32x32xf32>
    %cst_11 = arith.constant dense<0.000000e+00> : vector<32x32xf32>
    %10 = tpu.matmul %3, %9, %cst_11 {dimension_numbers = #tpu.dot_dimension_numbers<[1], [0], [0], [1], [0, 0, 1, 1], [], []>} : vector<32x32xf32>, vector<32x32xf32>, vector<32x32xf32> -> vector<32x32xf32>
    %c0_12 = arith.constant 0 : index
    %c0_13 = arith.constant 0 : index
    %11 = vector.load %arg5[%c0_12, %c0_13] : memref<1x32xf32, #tpu.memory_space<vmem>>, vector<1x32xf32>
    %12 = vector.broadcast %11 : vector<1x32xf32> to vector<32x32xf32>
    %13 = arith.addf %10, %12 : vector<32x32xf32>
    %14 = vector.extract_strided_slice %8 {offsets = [0, 0], sizes = [32, 8], strides = [1, 1]} : vector<32x16xf32> to vector<32x8xf32>
    %15 = vector.extract_strided_slice %8 {offsets = [0, 8], sizes = [32, 8], strides = [1, 1]} : vector<32x16xf32> to vector<32x8xf32>
    %16 = vector.extract_strided_slice %13 {offsets = [0, 0], sizes = [32, 8], strides = [1, 1]} : vector<32x32xf32> to vector<32x8xf32>
    %17 = vector.extract_strided_slice %13 {offsets = [0, 8], sizes = [32, 8], strides = [1, 1]} : vector<32x32xf32> to vector<32x8xf32>
    %18 = vector.extract_strided_slice %13 {offsets = [0, 16], sizes = [32, 8], strides = [1, 1]} : vector<32x32xf32> to vector<32x8xf32>
    %19 = vector.extract_strided_slice %13 {offsets = [0, 24], sizes = [32, 8], strides = [1, 1]} : vector<32x32xf32> to vector<32x8xf32>
    %20 = vector.extract_strided_slice %14 {offsets = [0, 0], sizes = [8, 8], strides = [1, 1]} : vector<32x8xf32> to vector<8x8xf32>
    %21 = vector.extract_strided_slice %15 {offsets = [0, 0], sizes = [8, 8], strides = [1, 1]} : vector<32x8xf32> to vector<8x8xf32>
    %22 = tpu.concatenate %20, %21 in 0 : vector<8x8xf32>, vector<8x8xf32> -> vector<16x8xf32>
    %23 = vector.extract_strided_slice %16 {offsets = [0, 0], sizes = [8, 8], strides = [1, 1]} : vector<32x8xf32> to vector<8x8xf32>
    %24 = vector.extract_strided_slice %17 {offsets = [0, 0], sizes = [8, 8], strides = [1, 1]} : vector<32x8xf32> to vector<8x8xf32>
    %25 = tpu.concatenate %23, %24 in 0 : vector<8x8xf32>, vector<8x8xf32> -> vector<16x8xf32>
    %26 = vector.extract_strided_slice %18 {offsets = [0, 0], sizes = [8, 8], strides = [1, 1]} : vector<32x8xf32> to vector<8x8xf32>
    %27 = vector.extract_strided_slice %19 {offsets = [0, 0], sizes = [8, 8], strides = [1, 1]} : vector<32x8xf32> to vector<8x8xf32>
    %28 = tpu.concatenate %26, %27 in 0 : vector<8x8xf32>, vector<8x8xf32> -> vector<16x8xf32>
    %cst_14 = arith.constant dense<0.000000e+00> : vector<16x16xf32>
    %29 = tpu.matmul %22, %25, %cst_14 {dimension_numbers = #tpu.dot_dimension_numbers<[1], [1], [0], [0], [0, 0, 1, 0], [], []>} : vector<16x8xf32>, vector<16x8xf32>, vector<16x16xf32> -> vector<16x16xf32>
    %cst_15 = arith.constant 0.176776692 : f32
    %30 = vector.broadcast %cst_15 : f32 to vector<16x16xf32>
    %31 = arith.mulf %29, %30 : vector<16x16xf32>
    %cst_16 = arith.constant dense<0xFF800000> : vector<16xf32>
    %32 = vector.multi_reduction <maximumf>, %31, %cst_16 [1] : vector<16x16xf32> to vector<16xf32>
    %33 = vector.shape_cast %32 : vector<16xf32> to vector<16x1xf32>
    %34 = vector.broadcast %33 : vector<16x1xf32> to vector<16x16xf32>
    %35 = arith.subf %31, %34 : vector<16x16xf32>
    %36 = math.exp %35 : vector<16x16xf32>
    %cst_17 = arith.constant dense<0.000000e+00> : vector<16xf32>
    %37 = vector.multi_reduction <add>, %36, %cst_17 [1] : vector<16x16xf32> to vector<16xf32>
    %38 = vector.shape_cast %37 : vector<16xf32> to vector<16x1xf32>
    %39 = tpu.reciprocal %38 {approx = true} : vector<16x1xf32> -> vector<16x1xf32>
    %40 = vector.broadcast %39 : vector<16x1xf32> to vector<16x16xf32>
    %41 = arith.mulf %36, %40 : vector<16x16xf32>
    %cst_18 = arith.constant dense<0.000000e+00> : vector<16x8xf32>
    %42 = tpu.matmul %41, %28, %cst_18 {dimension_numbers = #tpu.dot_dimension_numbers<[1], [0], [0], [1], [0, 0, 1, 1], [], []>} : vector<16x16xf32>, vector<16x8xf32>, vector<16x8xf32> -> vector<16x8xf32>
    %43 = vector.extract_strided_slice %42 {offsets = [0, 0], sizes = [8, 8], strides = [1, 1]} : vector<16x8xf32> to vector<8x8xf32>
    %44 = vector.extract_strided_slice %42 {offsets = [8, 0], sizes = [8, 8], strides = [1, 1]} : vector<16x8xf32> to vector<8x8xf32>
    %45 = vector.extract_strided_slice %14 {offsets = [8, 0], sizes = [8, 8], strides = [1, 1]} : vector<32x8xf32> to vector<8x8xf32>
    %46 = vector.extract_strided_slice %15 {offsets = [8, 0], sizes = [8, 8], strides = [1, 1]} : vector<32x8xf32> to vector<8x8xf32>
    %47 = tpu.concatenate %45, %46 in 0 : vector<8x8xf32>, vector<8x8xf32> -> vector<16x8xf32>
    %48 = vector.extract_strided_slice %16 {offsets = [8, 0], sizes = [8, 8], strides = [1, 1]} : vector<32x8xf32> to vector<8x8xf32>
    %49 = vector.extract_strided_slice %17 {offsets = [8, 0], sizes = [8, 8], strides = [1, 1]} : vector<32x8xf32> to vector<8x8xf32>
    %50 = tpu.concatenate %48, %49 in 0 : vector<8x8xf32>, vector<8x8xf32> -> vector<16x8xf32>
    %51 = vector.extract_strided_slice %18 {offsets = [8, 0], sizes = [8, 8], strides = [1, 1]} : vector<32x8xf32> to vector<8x8xf32>
    %52 = vector.extract_strided_slice %19 {offsets = [8, 0], sizes = [8, 8], strides = [1, 1]} : vector<32x8xf32> to vector<8x8xf32>
    %53 = tpu.concatenate %51, %52 in 0 : vector<8x8xf32>, vector<8x8xf32> -> vector<16x8xf32>
    %cst_19 = arith.constant dense<0.000000e+00> : vector<16x16xf32>
    %54 = tpu.matmul %47, %50, %cst_19 {dimension_numbers = #tpu.dot_dimension_numbers<[1], [1], [0], [0], [0, 0, 1, 0], [], []>} : vector<16x8xf32>, vector<16x8xf32>, vector<16x16xf32> -> vector<16x16xf32>
    %cst_20 = arith.constant 0.176776692 : f32
    %55 = vector.broadcast %cst_20 : f32 to vector<16x16xf32>
    %56 = arith.mulf %54, %55 : vector<16x16xf32>
    %cst_21 = arith.constant dense<0xFF800000> : vector<16xf32>
    %57 = vector.multi_reduction <maximumf>, %56, %cst_21 [1] : vector<16x16xf32> to vector<16xf32>
    %58 = vector.shape_cast %57 : vector<16xf32> to vector<16x1xf32>
    %59 = vector.broadcast %58 : vector<16x1xf32> to vector<16x16xf32>
    %60 = arith.subf %56, %59 : vector<16x16xf32>
    %61 = math.exp %60 : vector<16x16xf32>
    %cst_22 = arith.constant dense<0.000000e+00> : vector<16xf32>
    %62 = vector.multi_reduction <add>, %61, %cst_22 [1] : vector<16x16xf32> to vector<16xf32>
    %63 = vector.shape_cast %62 : vector<16xf32> to vector<16x1xf32>
    %64 = tpu.reciprocal %63 {approx = true} : vector<16x1xf32> -> vector<16x1xf32>
    %65 = vector.broadcast %64 : vector<16x1xf32> to vector<16x16xf32>
    %66 = arith.mulf %61, %65 : vector<16x16xf32>
    %cst_23 = arith.constant dense<0.000000e+00> : vector<16x8xf32>
    %67 = tpu.matmul %66, %53, %cst_23 {dimension_numbers = #tpu.dot_dimension_numbers<[1], [0], [0], [1], [0, 0, 1, 1], [], []>} : vector<16x16xf32>, vector<16x8xf32>, vector<16x8xf32> -> vector<16x8xf32>
    %68 = vector.extract_strided_slice %67 {offsets = [0, 0], sizes = [8, 8], strides = [1, 1]} : vector<16x8xf32> to vector<8x8xf32>
    %69 = vector.extract_strided_slice %67 {offsets = [8, 0], sizes = [8, 8], strides = [1, 1]} : vector<16x8xf32> to vector<8x8xf32>
    %70 = vector.extract_strided_slice %14 {offsets = [16, 0], sizes = [8, 8], strides = [1, 1]} : vector<32x8xf32> to vector<8x8xf32>
    %71 = vector.extract_strided_slice %15 {offsets = [16, 0], sizes = [8, 8], strides = [1, 1]} : vector<32x8xf32> to vector<8x8xf32>
    %72 = tpu.concatenate %70, %71 in 0 : vector<8x8xf32>, vector<8x8xf32> -> vector<16x8xf32>
    %73 = vector.extract_strided_slice %16 {offsets = [16, 0], sizes = [8, 8], strides = [1, 1]} : vector<32x8xf32> to vector<8x8xf32>
    %74 = vector.extract_strided_slice %17 {offsets = [16, 0], sizes = [8, 8], strides = [1, 1]} : vector<32x8xf32> to vector<8x8xf32>
    %75 = tpu.concatenate %73, %74 in 0 : vector<8x8xf32>, vector<8x8xf32> -> vector<16x8xf32>
    %76 = vector.extract_strided_slice %18 {offsets = [16, 0], sizes = [8, 8], strides = [1, 1]} : vector<32x8xf32> to vector<8x8xf32>
    %77 = vector.extract_strided_slice %19 {offsets = [16, 0], sizes = [8, 8], strides = [1, 1]} : vector<32x8xf32> to vector<8x8xf32>
    %78 = tpu.concatenate %76, %77 in 0 : vector<8x8xf32>, vector<8x8xf32> -> vector<16x8xf32>
    %cst_24 = arith.constant dense<0.000000e+00> : vector<16x16xf32>
    %79 = tpu.matmul %72, %75, %cst_24 {dimension_numbers = #tpu.dot_dimension_numbers<[1], [1], [0], [0], [0, 0, 1, 0], [], []>} : vector<16x8xf32>, vector<16x8xf32>, vector<16x16xf32> -> vector<16x16xf32>
    %cst_25 = arith.constant 0.176776692 : f32
    %80 = vector.broadcast %cst_25 : f32 to vector<16x16xf32>
    %81 = arith.mulf %79, %80 : vector<16x16xf32>
    %cst_26 = arith.constant dense<0xFF800000> : vector<16xf32>
    %82 = vector.multi_reduction <maximumf>, %81, %cst_26 [1] : vector<16x16xf32> to vector<16xf32>
    %83 = vector.shape_cast %82 : vector<16xf32> to vector<16x1xf32>
    %84 = vector.broadcast %83 : vector<16x1xf32> to vector<16x16xf32>
    %85 = arith.subf %81, %84 : vector<16x16xf32>
    %86 = math.exp %85 : vector<16x16xf32>
    %cst_27 = arith.constant dense<0.000000e+00> : vector<16xf32>
    %87 = vector.multi_reduction <add>, %86, %cst_27 [1] : vector<16x16xf32> to vector<16xf32>
    %88 = vector.shape_cast %87 : vector<16xf32> to vector<16x1xf32>
    %89 = tpu.reciprocal %88 {approx = true} : vector<16x1xf32> -> vector<16x1xf32>
    %90 = vector.broadcast %89 : vector<16x1xf32> to vector<16x16xf32>
    %91 = arith.mulf %86, %90 : vector<16x16xf32>
    %cst_28 = arith.constant dense<0.000000e+00> : vector<16x8xf32>
    %92 = tpu.matmul %91, %78, %cst_28 {dimension_numbers = #tpu.dot_dimension_numbers<[1], [0], [0], [1], [0, 0, 1, 1], [], []>} : vector<16x16xf32>, vector<16x8xf32>, vector<16x8xf32> -> vector<16x8xf32>
    %93 = vector.extract_strided_slice %92 {offsets = [0, 0], sizes = [8, 8], strides = [1, 1]} : vector<16x8xf32> to vector<8x8xf32>
    %94 = vector.extract_strided_slice %92 {offsets = [8, 0], sizes = [8, 8], strides = [1, 1]} : vector<16x8xf32> to vector<8x8xf32>
    %95 = vector.extract_strided_slice %14 {offsets = [24, 0], sizes = [8, 8], strides = [1, 1]} : vector<32x8xf32> to vector<8x8xf32>
    %96 = vector.extract_strided_slice %15 {offsets = [24, 0], sizes = [8, 8], strides = [1, 1]} : vector<32x8xf32> to vector<8x8xf32>
    %97 = tpu.concatenate %95, %96 in 0 : vector<8x8xf32>, vector<8x8xf32> -> vector<16x8xf32>
    %98 = vector.extract_strided_slice %16 {offsets = [24, 0], sizes = [8, 8], strides = [1, 1]} : vector<32x8xf32> to vector<8x8xf32>
    %99 = vector.extract_strided_slice %17 {offsets = [24, 0], sizes = [8, 8], strides = [1, 1]} : vector<32x8xf32> to vector<8x8xf32>
    %100 = tpu.concatenate %98, %99 in 0 : vector<8x8xf32>, vector<8x8xf32> -> vector<16x8xf32>
    %101 = vector.extract_strided_slice %18 {offsets = [24, 0], sizes = [8, 8], strides = [1, 1]} : vector<32x8xf32> to vector<8x8xf32>
    %102 = vector.extract_strided_slice %19 {offsets = [24, 0], sizes = [8, 8], strides = [1, 1]} : vector<32x8xf32> to vector<8x8xf32>
    %103 = tpu.concatenate %101, %102 in 0 : vector<8x8xf32>, vector<8x8xf32> -> vector<16x8xf32>
    %cst_29 = arith.constant dense<0.000000e+00> : vector<16x16xf32>
    %104 = tpu.matmul %97, %100, %cst_29 {dimension_numbers = #tpu.dot_dimension_numbers<[1], [1], [0], [0], [0, 0, 1, 0], [], []>} : vector<16x8xf32>, vector<16x8xf32>, vector<16x16xf32> -> vector<16x16xf32>
    %cst_30 = arith.constant 0.176776692 : f32
    %105 = vector.broadcast %cst_30 : f32 to vector<16x16xf32>
    %106 = arith.mulf %104, %105 : vector<16x16xf32>
    %cst_31 = arith.constant dense<0xFF800000> : vector<16xf32>
    %107 = vector.multi_reduction <maximumf>, %106, %cst_31 [1] : vector<16x16xf32> to vector<16xf32>
    %108 = vector.shape_cast %107 : vector<16xf32> to vector<16x1xf32>
    %109 = vector.broadcast %108 : vector<16x1xf32> to vector<16x16xf32>
    %110 = arith.subf %106, %109 : vector<16x16xf32>
    %111 = math.exp %110 : vector<16x16xf32>
    %cst_32 = arith.constant dense<0.000000e+00> : vector<16xf32>
    %112 = vector.multi_reduction <add>, %111, %cst_32 [1] : vector<16x16xf32> to vector<16xf32>
    %113 = vector.shape_cast %112 : vector<16xf32> to vector<16x1xf32>
    %114 = tpu.reciprocal %113 {approx = true} : vector<16x1xf32> -> vector<16x1xf32>
    %115 = vector.broadcast %114 : vector<16x1xf32> to vector<16x16xf32>
    %116 = arith.mulf %111, %115 : vector<16x16xf32>
    %cst_33 = arith.constant dense<0.000000e+00> : vector<16x8xf32>
    %117 = tpu.matmul %116, %103, %cst_33 {dimension_numbers = #tpu.dot_dimension_numbers<[1], [0], [0], [1], [0, 0, 1, 1], [], []>} : vector<16x16xf32>, vector<16x8xf32>, vector<16x8xf32> -> vector<16x8xf32>
    %118 = vector.extract_strided_slice %117 {offsets = [0, 0], sizes = [8, 8], strides = [1, 1]} : vector<16x8xf32> to vector<8x8xf32>
    %119 = vector.extract_strided_slice %117 {offsets = [8, 0], sizes = [8, 8], strides = [1, 1]} : vector<16x8xf32> to vector<8x8xf32>
    %120 = tpu.concatenate %43, %68, %93, %118 in 0 : vector<8x8xf32>, vector<8x8xf32>, vector<8x8xf32>, vector<8x8xf32> -> vector<32x8xf32>
    %121 = tpu.concatenate %44, %69, %94, %119 in 0 : vector<8x8xf32>, vector<8x8xf32>, vector<8x8xf32>, vector<8x8xf32> -> vector<32x8xf32>
    %c0_34 = arith.constant 0 : index
    %c0_35 = arith.constant 0 : index
    %122 = vector.load %arg6[%c0_34, %c0_35] : memref<16x32xf32, #tpu.memory_space<vmem>>, vector<16x32xf32>
    %123 = vector.extract_strided_slice %122 {offsets = [0, 0], sizes = [8, 32], strides = [1, 1]} : vector<16x32xf32> to vector<8x32xf32>
    %cst_36 = arith.constant dense<0.000000e+00> : vector<32x32xf32>
    %124 = tpu.matmul %120, %123, %cst_36 {dimension_numbers = #tpu.dot_dimension_numbers<[1], [0], [0], [1], [0, 0, 1, 1], [], []>} : vector<32x8xf32>, vector<8x32xf32>, vector<32x32xf32> -> vector<32x32xf32>
    %125 = vector.extract_strided_slice %122 {offsets = [8, 0], sizes = [8, 32], strides = [1, 1]} : vector<16x32xf32> to vector<8x32xf32>
    %cst_37 = arith.constant dense<0.000000e+00> : vector<32x32xf32>
    %126 = tpu.matmul %121, %125, %cst_37 {dimension_numbers = #tpu.dot_dimension_numbers<[1], [0], [0], [1], [0, 0, 1, 1], [], []>} : vector<32x8xf32>, vector<8x32xf32>, vector<32x32xf32> -> vector<32x32xf32>
    %127 = arith.addf %124, %126 : vector<32x32xf32>
    %c0_38 = arith.constant 0 : index
    %c0_39 = arith.constant 0 : index
    %128 = vector.load %arg7[%c0_38, %c0_39] : memref<1x32xf32, #tpu.memory_space<vmem>>, vector<1x32xf32>
    %129 = vector.broadcast %128 : vector<1x32xf32> to vector<32x32xf32>
    %130 = arith.addf %127, %129 : vector<32x32xf32>
    %131 = vector.shape_cast %130 : vector<32x32xf32> to vector<2x16x32xf32>
    %132 = arith.addf %0, %131 : vector<2x16x32xf32>
    %cst_40 = arith.constant dense<0.000000e+00> : vector<2x16xf32>
    %133 = vector.multi_reduction <add>, %132, %cst_40 [2] : vector<2x16x32xf32> to vector<2x16xf32>
    %134 = vector.shape_cast %133 : vector<2x16xf32> to vector<2x16x1xf32>
    %cst_41 = arith.constant dense<0.000000e+00> : vector<2x1xf32>
    %135 = vector.multi_reduction <add>, %134, %cst_41 [1] : vector<2x16x1xf32> to vector<2x1xf32>
    %136 = vector.shape_cast %135 : vector<2x1xf32> to vector<2x1x1xf32>
    %cst_42 = arith.constant 0.001953125 : f32
    %137 = vector.broadcast %cst_42 : f32 to vector<2x1x1xf32>
    %138 = arith.mulf %136, %137 : vector<2x1x1xf32>
    %139 = vector.broadcast %138 : vector<2x1x1xf32> to vector<2x16x32xf32>
    %140 = arith.subf %132, %139 : vector<2x16x32xf32>
    %141 = arith.mulf %140, %140 : vector<2x16x32xf32>
    %cst_43 = arith.constant dense<0.000000e+00> : vector<2x16xf32>
    %142 = vector.multi_reduction <add>, %141, %cst_43 [2] : vector<2x16x32xf32> to vector<2x16xf32>
    %143 = vector.shape_cast %142 : vector<2x16xf32> to vector<2x16x1xf32>
    %cst_44 = arith.constant dense<0.000000e+00> : vector<2x1xf32>
    %144 = vector.multi_reduction <add>, %143, %cst_44 [1] : vector<2x16x1xf32> to vector<2x1xf32>
    %145 = vector.shape_cast %144 : vector<2x1xf32> to vector<2x1x1xf32>
    %cst_45 = arith.constant 0.001953125 : f32
    %146 = vector.broadcast %cst_45 : f32 to vector<2x1x1xf32>
    %147 = arith.mulf %145, %146 : vector<2x1x1xf32>
    %cst_46 = arith.constant 9.99999974E-6 : f32
    %148 = vector.broadcast %cst_46 : f32 to vector<2x1x1xf32>
    %149 = arith.addf %147, %148 : vector<2x1x1xf32>
    %150 = math.rsqrt %149 : vector<2x1x1xf32>
    %151 = vector.broadcast %150 : vector<2x1x1xf32> to vector<2x16x32xf32>
    %152 = arith.mulf %140, %151 : vector<2x16x32xf32>
    %153 = vector.shape_cast %152 : vector<2x16x32xf32> to vector<32x32xf32>
    %c0_47 = arith.constant 0 : index
    %c0_48 = arith.constant 0 : index
    %154 = vector.load %arg8[%c0_47, %c0_48] : memref<32x64xf32, #tpu.memory_space<vmem>>, vector<32x64xf32>
    %cst_49 = arith.constant dense<0.000000e+00> : vector<32x64xf32>
    %155 = tpu.matmul %153, %154, %cst_49 {dimension_numbers = #tpu.dot_dimension_numbers<[1], [0], [0], [1], [0, 0, 1, 1], [], []>} : vector<32x32xf32>, vector<32x64xf32>, vector<32x64xf32> -> vector<32x64xf32>
    %c0_50 = arith.constant 0 : index
    %c0_51 = arith.constant 0 : index
    %156 = vector.load %arg9[%c0_50, %c0_51] : memref<1x64xf32, #tpu.memory_space<vmem>>, vector<1x64xf32>
    %157 = vector.broadcast %156 : vector<1x64xf32> to vector<32x64xf32>
    %158 = arith.addf %155, %157 : vector<32x64xf32>
    %cst_52 = arith.constant 5.000000e-01 : f32
    %159 = vector.broadcast %cst_52 : f32 to vector<32x64xf32>
    %160 = arith.mulf %159, %158 : vector<32x64xf32>
    %cst_53 = arith.constant 4.471500e-02 : f32
    %161 = vector.broadcast %cst_53 : f32 to vector<32x64xf32>
    %162 = arith.mulf %161, %158 : vector<32x64xf32>
    %163 = arith.mulf %162, %158 : vector<32x64xf32>
    %164 = arith.mulf %163, %158 : vector<32x64xf32>
    %165 = arith.addf %158, %164 : vector<32x64xf32>
    %cst_54 = arith.constant 0.797884583 : f32
    %166 = vector.broadcast %cst_54 : f32 to vector<32x64xf32>
    %167 = arith.mulf %166, %165 : vector<32x64xf32>
    %168 = math.tanh %167 : vector<32x64xf32>
    %cst_55 = arith.constant 1.000000e+00 : f32
    %169 = vector.broadcast %cst_55 : f32 to vector<32x64xf32>
    %170 = arith.addf %169, %168 : vector<32x64xf32>
    %171 = arith.mulf %160, %170 : vector<32x64xf32>
    %c0_56 = arith.constant 0 : index
    %c0_57 = arith.constant 0 : index
    %172 = vector.load %arg10[%c0_56, %c0_57] : memref<64x32xf32, #tpu.memory_space<vmem>>, vector<64x32xf32>
    %cst_58 = arith.constant dense<0.000000e+00> : vector<32x32xf32>
    %173 = tpu.matmul %171, %172, %cst_58 {dimension_numbers = #tpu.dot_dimension_numbers<[1], [0], [0], [1], [0, 0, 1, 1], [], []>} : vector<32x64xf32>, vector<64x32xf32>, vector<32x32xf32> -> vector<32x32xf32>
    %c0_59 = arith.constant 0 : index
    %c0_60 = arith.constant 0 : index
    %174 = vector.load %arg11[%c0_59, %c0_60] : memref<1x32xf32, #tpu.memory_space<vmem>>, vector<1x32xf32>
    %175 = vector.broadcast %174 : vector<1x32xf32> to vector<32x32xf32>
    %176 = arith.addf %173, %175 : vector<32x32xf32>
    %177 = vector.shape_cast %176 : vector<32x32xf32> to vector<2x16x32xf32>
    %178 = arith.addf %152, %177 : vector<2x16x32xf32>
    %cst_61 = arith.constant dense<0.000000e+00> : vector<2x16xf32>
    %179 = vector.multi_reduction <add>, %178, %cst_61 [2] : vector<2x16x32xf32> to vector<2x16xf32>
    %180 = vector.shape_cast %179 : vector<2x16xf32> to vector<2x16x1xf32>
    %cst_62 = arith.constant dense<0.000000e+00> : vector<2x1xf32>
    %181 = vector.multi_reduction <add>, %180, %cst_62 [1] : vector<2x16x1xf32> to vector<2x1xf32>
    %182 = vector.shape_cast %181 : vector<2x1xf32> to vector<2x1x1xf32>
    %cst_63 = arith.constant 0.001953125 : f32
    %183 = vector.broadcast %cst_63 : f32 to vector<2x1x1xf32>
    %184 = arith.mulf %182, %183 : vector<2x1x1xf32>
    %185 = vector.broadcast %184 : vector<2x1x1xf32> to vector<2x16x32xf32>
    %186 = arith.subf %178, %185 : vector<2x16x32xf32>
    %187 = arith.mulf %186, %186 : vector<2x16x32xf32>
    %cst_64 = arith.constant dense<0.000000e+00> : vector<2x16xf32>
    %188 = vector.multi_reduction <add>, %187, %cst_64 [2] : vector<2x16x32xf32> to vector<2x16xf32>
    %189 = vector.shape_cast %188 : vector<2x16xf32> to vector<2x16x1xf32>
    %cst_65 = arith.constant dense<0.000000e+00> : vector<2x1xf32>
    %190 = vector.multi_reduction <add>, %189, %cst_65 [1] : vector<2x16x1xf32> to vector<2x1xf32>
    %191 = vector.shape_cast %190 : vector<2x1xf32> to vector<2x1x1xf32>
    %cst_66 = arith.constant 0.001953125 : f32
    %192 = vector.broadcast %cst_66 : f32 to vector<2x1x1xf32>
    %193 = arith.mulf %191, %192 : vector<2x1x1xf32>
    %cst_67 = arith.constant 9.99999974E-6 : f32
    %194 = vector.broadcast %cst_67 : f32 to vector<2x1x1xf32>
    %195 = arith.addf %193, %194 : vector<2x1x1xf32>
    %196 = math.rsqrt %195 : vector<2x1x1xf32>
    %197 = vector.broadcast %196 : vector<2x1x1xf32> to vector<2x16x32xf32>
    %198 = arith.mulf %186, %197 : vector<2x16x32xf32>
    %199 = arith.addf %198, %0 : vector<2x16x32xf32>
    %c0_68 = arith.constant 0 : index
    %c0_69 = arith.constant 0 : index
    %c0_70 = arith.constant 0 : index
    %200 = vector.load %arg12[%c0_68, %c0_69, %c0_70] : memref<2x16x32xf32, #tpu.memory_space<vmem>>, vector<2x16x32xf32>
    tpu.vector_store %arg12[%c0_68, %c0_69, %c0_70], %199 {strides = array<i32>} : memref<2x16x32xf32, #tpu.memory_space<vmem>>, vector<2x16x32xf32>,
    return
  }
}

</mosaic_0001>

<llo_original>
// kernel: cross_modal_forward.1
$region0: #{cross_modal_forward.1}
  #allocation0 [shape = 'u32[]', space=smem, size = 0x4, offset = 0x4, fixed_abs, tag = 'smem constant byte address 0x4 - core index']
  #allocation1 [shape = 'u32[144,128]{1,0:T(1,128)}', space=vmem, size = 0x12000, scoped, tag = 'internal scratch']
  %s0 = inlined_call_operand.vmem [shape: f32[2,16,32], index: 0, kind: input, shape index: {}]
  %s1 = inlined_call_operand.vmem [shape: f32[2,16,32], index: 1, kind: input, shape index: {}]
  %s2 = inlined_call_operand.vmem [shape: f32[32,16], index: 2, kind: input, shape index: {}]
  %s3 = inlined_call_operand.vmem [shape: f32[1,16], index: 3, kind: input, shape index: {}]
  %s4 = inlined_call_operand.vmem [shape: f32[32,32], index: 4, kind: input, shape index: {}]
  %s5 = inlined_call_operand.vmem [shape: f32[1,32], index: 5, kind: input, shape index: {}]
  %s6 = inlined_call_operand.hbm [shape: f32[16,32], index: 6, kind: input, shape index: {}]
  %s7 = inlined_call_operand.hbm [shape: f32[1,32], index: 7, kind: input, shape index: {}]
  %s8 = inlined_call_operand.vmem [shape: f32[32,64], index: 8, kind: input, shape index: {}]
  %s9 = inlined_call_operand.hbm [shape: f32[1,64], index: 9, kind: input, shape index: {}]
  %s10 = inlined_call_operand.vmem [shape: f32[64,32], index: 10, kind: input, shape index: {}]
  %s11 = inlined_call_operand.hbm [shape: f32[1,32], index: 11, kind: input, shape index: {}]
  %s12 = inlined_call_operand.hbm [shape: f32[2,16,32], index: 12, kind: output, shape index: {}]
  %s13 = sld [smem:[#allocation0]]
  $region74: #{cross_modal_forward.1} parent=0
    _
  %s15 = ssub.s32 1, %s13
  %s16 = scalar_select 0, %s15, %s13
  $region1: #{cross_modal_forward.1} parent=0
    #allocation2 [shape = 'u8[8192]{0}', space=vmem, size = 0x2000, scoped, tag = 'input window, operand 6, single buffered']
    #allocation3 [shape = 's32[1]{0}', space=sflag, size = 0x4, scoped, tag = 'scoped memory for cross_modal_forward.1']
    #allocation4 [shape = 's32[1]{0}', space=sflag, size = 0x4, scoped, tag = 'scoped memory for cross_modal_forward.1']
    #allocation5 [shape = 'u8[512]{0}', space=vmem, size = 0x400, scoped, tag = 'input window, operand 7, single buffered']
    #allocation6 [shape = 's32[1]{0}', space=sflag, size = 0x4, scoped, tag = 'scoped memory for cross_modal_forward.1']
    #allocation7 [shape = 'u8[512]{0}', space=vmem, size = 0x400, scoped, tag = 'input window, operand 9, single buffered']
    #allocation8 [shape = 'u8[512]{0}', space=vmem, size = 0x400, scoped, tag = 'input window, operand 11, single buffered']
    #allocation9 [shape = 's32[1]{0}', space=sflag, size = 0x4, scoped, tag = 'scoped memory for cross_modal_forward.1']
    #allocation10 [shape = 'u8[16384]{0}', space=vmem, size = 0x4000, scoped, tag = 'output window, operand 0, single buffered']
    %17 = vsyncpa [#allocation3], 0
    %18 = vsyncpa [#allocation6], 0
    %19 = vsyncpa [#allocation9], 0
    %20 = vsyncpa [#allocation4], 0
    // Predicated region
    $region2: #{cross_modal_forward.1} parent=1 // pred_check
      _
    $region3: #{cross_modal_forward.1} parent=1 // pred_check_branch
      %22 = sbr.rel (0) target = $region5
    $region4: #{cross_modal_forward.1} parent=1 // pred_region
      _
    $region5: #{cross_modal_forward.1} parent=1 // pred_fallthru
      _
    // Predicated region
    $region6: #{cross_modal_forward.1} parent=1 // pred_check
      _
    $region7: #{cross_modal_forward.1} parent=1 // pred_check_branch
      %24 = sbr.rel (0) target = $region9
    $region8: #{cross_modal_forward.1} parent=1 // pred_region
      _
    $region9: #{cross_modal_forward.1} parent=1 // pred_fallthru
      _
    // Predicated region
    $region10: #{cross_modal_forward.1} parent=1 // pred_check
      _
    $region11: #{cross_modal_forward.1} parent=1 // pred_check_branch
      %26 = sbr.rel (0) target = $region13
    $region12: #{cross_modal_forward.1} parent=1 // pred_region
      _
    $region13: #{cross_modal_forward.1} parent=1 // pred_fallthru
      _
    // Predicated region
    $region14: #{cross_modal_forward.1} parent=1 // pred_check
      _
    $region15: #{cross_modal_forward.1} parent=1 // pred_check_branch
      %28 = sbr.rel (0) target = $region17
    $region16: #{cross_modal_forward.1} parent=1 // pred_region
      _
    $region17: #{cross_modal_forward.1} parent=1 // pred_fallthru
      _
    // Predicated region
    $region18: #{cross_modal_forward.1} parent=1 // pred_check
      _
    $region19: #{cross_modal_forward.1} parent=1 // pred_check_branch
      %30 = sbr.rel (0) target = $region21
    $region20: #{cross_modal_forward.1} parent=1 // pred_region
      _
    $region21: #{cross_modal_forward.1} parent=1 // pred_fallthru
      _
    // Predicated region
    $region22: #{cross_modal_forward.1} parent=1 // pred_check
      _
    $region23: #{cross_modal_forward.1} parent=1 // pred_check_branch
      %32 = sbr.rel (0) target = $region25
    $region24: #{cross_modal_forward.1} parent=1 // pred_region
      _
    $region25: #{cross_modal_forward.1} parent=1 // pred_fallthru
      _
    // Predicated region
    $region26: #{cross_modal_forward.1} parent=1 // pred_check
      _
    $region27: #{cross_modal_forward.1} parent=1 // pred_check_branch
      %34 = sbr.rel (0) target = $region29
    $region28: #{cross_modal_forward.1} parent=1 // pred_region
      %s36 = ssub.s32 256, 256
      %37 = vsyncadd [#allocation3], %s36
      %s38 = sshll.u32 [#allocation2], 4
      %s39 = int_to_ptr.vmem [resolvable:$true] %s38
      %44 = dma.hbm_to_vmem [thread:$0]  %s6, 256, %s39, [#allocation3], 128, 128, 8
    $region29: #{cross_modal_forward.1} parent=1 // pred_fallthru
      _
    // Predicated region
    $region30: #{cross_modal_forward.1} parent=1 // pred_check
      _
    $region31: #{cross_modal_forward.1} parent=1 // pred_check_branch
      %46 = sbr.rel (0) target = $region33
    $region32: #{cross_modal_forward.1} parent=1 // pred_region
      %s48 = ssub.s32 16, 16
      %49 = vsyncadd [#allocation6], %s48
      %s51 = sshll.u32 [#allocation5], 4
      %s52 = int_to_ptr.vmem [resolvable:$true] %s51
      %54 = dma.hbm_to_vmem [thread:$0]  %s7, 16, %s52, [#allocation6]
    $region33: #{cross_modal_forward.1} parent=1 // pred_fallthru
      _
    // Predicated region
    $region34: #{cross_modal_forward.1} parent=1 // pred_check
      _
    $region35: #{cross_modal_forward.1} parent=1 // pred_check_branch
      %56 = sbr.rel (0) target = $region37
    $region36: #{cross_modal_forward.1} parent=1 // pred_region
      _
    $region37: #{cross_modal_forward.1} parent=1 // pred_fallthru
      _
    // Predicated region
    $region38: #{cross_modal_forward.1} parent=1 // pred_check
      _
    $region39: #{cross_modal_forward.1} parent=1 // pred_check_branch
      %58 = sbr.rel (0) target = $region41
    $region40: #{cross_modal_forward.1} parent=1 // pred_region
      %s60 = ssub.s32 16, 16
      %61 = vsyncadd [#allocation6], %s60
      %s63 = sshll.u32 [#allocation7], 4
      %s64 = int_to_ptr.vmem [resolvable:$true] %s63
      %66 = dma.hbm_to_vmem [thread:$0]  %s9, 16, %s64, [#allocation6]
    $region41: #{cross_modal_forward.1} parent=1 // pred_fallthru
      _
    // Predicated region
    $region42: #{cross_modal_forward.1} parent=1 // pred_check
      _
    $region43: #{cross_modal_forward.1} parent=1 // pred_check_branch
      %68 = sbr.rel (0) target = $region45
    $region44: #{cross_modal_forward.1} parent=1 // pred_region
      _
    $region45: #{cross_modal_forward.1} parent=1 // pred_fallthru
      _
    // Predicated region
    $region46: #{cross_modal_forward.1} parent=1 // pred_check
      _
    $region47: #{cross_modal_forward.1} parent=1 // pred_check_branch
      %70 = sbr.rel (0) target = $region49
    $region48: #{cross_modal_forward.1} parent=1 // pred_region
      %s72 = ssub.s32 16, 16
      %73 = vsyncadd [#allocation9], %s72
      %s75 = sshll.u32 [#allocation8], 4
      %s76 = int_to_ptr.vmem [resolvable:$true] %s75
      %78 = dma.hbm_to_vmem [thread:$0]  %s11, 16, %s76, [#allocation9]
    $region49: #{cross_modal_forward.1} parent=1 // pred_fallthru
      _
    // Predicated region
    $region50: #{cross_modal_forward.1} parent=1 // pred_check
      _
    $region51: #{cross_modal_forward.1} parent=1 // pred_check_branch
      %80 = sbr.rel (0) target = $region53
    $region52: #{cross_modal_forward.1} parent=1 // pred_region
      %81 = dma.done [#allocation3], 256
    $region53: #{cross_modal_forward.1} parent=1 // pred_fallthru
      _
    // Predicated region
    $region54: #{cross_modal_forward.1} parent=1 // pred_check
      _
    $region55: #{cross_modal_forward.1} parent=1 // pred_check_branch
      %83 = sbr.rel (0) target = $region57
    $region56: #{cross_modal_forward.1} parent=1 // pred_region
      %84 = dma.done [#allocation6], 16
    $region57: #{cross_modal_forward.1} parent=1 // pred_fallthru
      _
    // Predicated region
    $region58: #{cross_modal_forward.1} parent=1 // pred_check
      _
    $region59: #{cross_modal_forward.1} parent=1 // pred_check_branch
      %86 = sbr.rel (0) target = $region61
    $region60: #{cross_modal_forward.1} parent=1 // pred_region
      %87 = dma.done [#allocation6], 16
    $region61: #{cross_modal_forward.1} parent=1 // pred_fallthru
      _
    // Predicated region
    $region62: #{cross_modal_forward.1} parent=1 // pred_check
      _
    $region63: #{cross_modal_forward.1} parent=1 // pred_check_branch
      %89 = sbr.rel (0) target = $region65
    $region64: #{cross_modal_forward.1} parent=1 // pred_region
      %90 = dma.done [#allocation9], 16
    $region65: #{cross_modal_forward.1} parent=1 // pred_fallthru
      _
    %v91 = vld [vmem:[%s0] sm:$0xff]
    %v92 = vld [vmem:[%s0 + $0x8] sm:$0xff]
    %v93 = vld [vmem:[%s0 + $0x10] sm:$0xff]
    %v94 = vld [vmem:[%s0 + $0x18] sm:$0xff]
    %v95 = vld [vmem:[%s1] sm:$0xff]
    %v96 = vld [vmem:[%s1 + $0x8] sm:$0xff]
    %v97 = vld [vmem:[%s1 + $0x10] sm:$0xff]
    %v98 = vld [vmem:[%s1 + $0x18] sm:$0xff]
    %v99 = vld [vmem:[%s2] sm:$0xff]
    %v100 = vld [vmem:[%s2 + $0x8] sm:$0xff]
    %v101 = vld [vmem:[%s2 + $0x10] sm:$0xff]
    %v102 = vld [vmem:[%s2 + $0x18] sm:$0xff]
    %v103 = vld [vmem:[%s3] sm:$0x1]
    %v105 = vlaneseq
    %v106 = vshrl.u32 %v105, 7
    %v107 = vsub.s32 0, %v106
    %v108 = vrot.slane %v103, %v107
    %vm110 = vcmask 261120
    %v112 = vsel %vm110, %v91, 0
    %v115 = vsel %vm110, %v92, 0
    %v118 = vsel %vm110, %v93, 0
    %v121 = vsel %vm110, %v94, 0
    %123 = vmatprep.subr.mxu0 0.0
    %124 = vmatpush1.msra.mxu0 %v99
    %125 = vmatprep.subr.mxu0 0.0
    %126 = vmatpush1.msra.mxu0 %v100
    %127 = vmatprep.subr.mxu0 0.0
    %128 = vmatpush1.msra.mxu0 %v101
    %129 = vmatprep.subr.mxu0 0.0
    %130 = vmatpush1.msra.mxu0 %v102
    %131 = vmatprep.subr.mxu0 0.0
    %132 = vmatpush1.msra.mxu0 0.0
    %133 = vmatprep.subr.mxu0 0.0
    %134 = vmatpush1.msra.mxu0 0.0
    %135 = vmatprep.subr.mxu0 0.0
    %136 = vmatpush1.msra.mxu0 0.0
    %137 = vmatprep.subr.mxu0 0.0
    %138 = vmatpush1.msra.mxu0 0.0
    %139 = vmatprep.subr.mxu0 0.0
    %140 = vmatpush1.msra.mxu0 0.0
    %141 = vmatprep.subr.mxu0 0.0
    %142 = vmatpush1.msra.mxu0 0.0
    %143 = vmatprep.subr.mxu0 0.0
    %144 = vmatpush1.msra.mxu0 0.0
    %145 = vmatprep.subr.mxu0 0.0
    %146 = vmatpush1.msra.mxu0 0.0
    %147 = vmatprep.subr.mxu0 0.0
    %148 = vmatpush1.msra.mxu0 0.0
    %149 = vmatprep.subr.mxu0 0.0
    %150 = vmatpush1.msra.mxu0 0.0
    %151 = vmatprep.subr.mxu0 0.0
    %152 = vmatpush1.msra.mxu0 0.0
    %153 = vmatprep.subr.mxu0 0.0
    %154 = vmatpush1.msra.mxu0 0.0
    %155 = vmatprep.subr.mxu0 0.0
    %156 = vmatpush1.msra.mxu0 0.0
    %157 = vmatprep.subr.mxu0 0.0
    %158 = vmatpush1.msra.mxu0 0.0
    %159 = vmatprep.subr.mxu0 0.0
    %160 = vmatpush1.msra.mxu0 0.0
    %161 = vmatprep.subr.mxu0 0.0
    %162 = vmatpush1.msra.mxu0 0.0
    %163 = vmatprep.subr.mxu0 0.0
    %164 = vmatpush1.msra.mxu0 0.0
    %165 = vmatprep.subr.mxu0 0.0
    %166 = vmatpush1.msra.mxu0 0.0
    %167 = vmatprep.subr.mxu0 0.0
    %168 = vmatpush1.msra.mxu0 0.0
    %169 = vmatprep.subr.mxu0 0.0
    %170 = vmatpush1.msra.mxu0 0.0
    %171 = vmatprep.subr.mxu0 0.0
    %172 = vmatpush1.msra.mxu0 0.0
    %173 = vmatprep.subr.mxu0 0.0
    %174 = vmatpush1.msra.mxu0 0.0
    %175 = vmatprep.subr.mxu0 0.0
    %176 = vmatpush1.msra.mxu0 0.0
    %177 = vmatprep.subr.mxu0 0.0
    %178 = vmatpush1.msra.mxu0 0.0
    %179 = vmatprep.subr.mxu0 0.0
    %180 = vmatpush1.msra.mxu0 0.0
    %181 = vmatprep.subr.mxu0 0.0
    %182 = vmatpush1.msra.mxu0 0.0
    %183 = vmatprep.subr.mxu0 0.0
    %184 = vmatpush1.msra.mxu0 0.0
    %185 = vmatprep.subr.mxu0 0.0
    %186 = vmatpush1.msra.mxu0 0.0
    %187 = vmatprep.mubr.f32.mxu0 0.0
    %188 = vmatmul.mubr.f32.gmra.mrb[0].mxu0 %v112
    %v189 = vpop.f32.mrb[0].mxu0
    %v190 = vadd.f32 %v108, %v189
    %v191 = vpop.f32.mrb[0].mxu0
    %192 = vmatprep.mubr.f32.mxu0 0.0
    %193 = vmatmul.mubr.f32.gmra.mrb[0].mxu0 %v115
    %v194 = vpop.f32.mrb[0].mxu0
    %v195 = vadd.f32 %v108, %v194
    %v196 = vpop.f32.mrb[0].mxu0
    %197 = vmatprep.mubr.f32.mxu0 0.0
    %198 = vmatmul.mubr.f32.gmra.mrb[0].mxu0 %v118
    %v199 = vpop.f32.mrb[0].mxu0
    %v200 = vadd.f32 %v108, %v199
    %v201 = vpop.f32.mrb[0].mxu0
    %202 = vmatprep.mubr.f32.mxu0 0.0
    %203 = vmatmul.mubr.f32.gmra.mrb[0].mxu0 %v121
    %v204 = vpop.f32.mrb[0].mxu0
    %v205 = vadd.f32 %v108, %v204
    %v206 = vpop.f32.mrb[0].mxu0
    %207 = vdwg.mxu0
    %v208 = vld [vmem:[%s4] sm:$0xff]
    %v209 = vld [vmem:[%s4 + $0x8] sm:$0xff]
    %v210 = vld [vmem:[%s4 + $0x10] sm:$0xff]
    %v211 = vld [vmem:[%s4 + $0x18] sm:$0xff]
    %v212 = vld [vmem:[%s5] sm:$0x1]
    %v214 = vlaneseq
    %v215 = vshrl.u32 %v214, 7
    %v216 = vsub.s32 0, %v215
    %v217 = vrot.slane %v212, %v216
    %v220 = vsel %vm110, %v95, 0
    %v223 = vsel %vm110, %v96, 0
    %v226 = vsel %vm110, %v97, 0
    %v229 = vsel %vm110, %v98, 0
    %231 = vmatprep.subr.mxu0 0.0
    %232 = vmatpush1.msra.mxu0 %v208
    %233 = vmatprep.subr.mxu0 0.0
    %234 = vmatpush1.msra.mxu0 %v209
    %235 = vmatprep.subr.mxu0 0.0
    %236 = vmatpush1.msra.mxu0 %v210
    %237 = vmatprep.subr.mxu0 0.0
    %238 = vmatpush1.msra.mxu0 %v211
    %239 = vmatprep.subr.mxu0 0.0
    %240 = vmatpush1.msra.mxu0 0.0
    %241 = vmatprep.subr.mxu0 0.0
    %242 = vmatpush1.msra.mxu0 0.0
    %243 = vmatprep.subr.mxu0 0.0
    %244 = vmatpush1.msra.mxu0 0.0
    %245 = vmatprep.subr.mxu0 0.0
    %246 = vmatpush1.msra.mxu0 0.0
    %247 = vmatprep.subr.mxu0 0.0
    %248 = vmatpush1.msra.mxu0 0.0
    %249 = vmatprep.subr.mxu0 0.0
    %250 = vmatpush1.msra.mxu0 0.0
    %251 = vmatprep.subr.mxu0 0.0
    %252 = vmatpush1.msra.mxu0 0.0
    %253 = vmatprep.subr.mxu0 0.0
    %254 = vmatpush1.msra.mxu0 0.0
    %255 = vmatprep.subr.mxu0 0.0
    %256 = vmatpush1.msra.mxu0 0.0
    %257 = vmatprep.subr.mxu0 0.0
    %258 = vmatpush1.msra.mxu0 0.0
    %259 = vmatprep.subr.mxu0 0.0
    %260 = vmatpush1.msra.mxu0 0.0
    %261 = vmatprep.subr.mxu0 0.0
    %262 = vmatpush1.msra.mxu0 0.0
    %263 = vmatprep.subr.mxu0 0.0
    %264 = vmatpush1.msra.mxu0 0.0
    %265 = vmatprep.subr.mxu0 0.0
    %266 = vmatpush1.msra.mxu0 0.0
    %267 = vmatprep.subr.mxu0 0.0
    %268 = vmatpush1.msra.mxu0 0.0
    %269 = vmatprep.subr.mxu0 0.0
    %270 = vmatpush1.msra.mxu0 0.0
    %271 = vmatprep.subr.mxu0 0.0
    %272 = vmatpush1.msra.mxu0 0.0
    %273 = vmatprep.subr.mxu0 0.0
    %274 = vmatpush1.msra.mxu0 0.0
    %275 = vmatprep.subr.mxu0 0.0
    %276 = vmatpush1.msra.mxu0 0.0
    %277 = vmatprep.subr.mxu0 0.0
    %278 = vmatpush1.msra.mxu0 0.0
    %279 = vmatprep.subr.mxu0 0.0
    %280 = vmatpush1.msra.mxu0 0.0
    %281 = vmatprep.subr.mxu0 0.0
    %282 = vmatpush1.msra.mxu0 0.0
    %283 = vmatprep.subr.mxu0 0.0
    %284 = vmatpush1.msra.mxu0 0.0
    %285 = vmatprep.subr.mxu0 0.0
    %286 = vmatpush1.msra.mxu0 0.0
    %287 = vmatprep.subr.mxu0 0.0
    %288 = vmatpush1.msra.mxu0 0.0
    %289 = vmatprep.subr.mxu0 0.0
    %290 = vmatpush1.msra.mxu0 0.0
    %291 = vmatprep.subr.mxu0 0.0
    %292 = vmatpush1.msra.mxu0 0.0
    %293 = vmatprep.subr.mxu0 0.0
    %294 = vmatpush1.msra.mxu0 0.0
    %295 = vmatprep.mubr.f32.mxu0 0.0
    %296 = vmatmul.mubr.f32.gmra.mrb[0].mxu0 %v220
    %v297 = vpop.f32.mrb[0].mxu0
    %v298 = vadd.f32 %v217, %v297
    %v299 = vpop.f32.mrb[0].mxu0
    %300 = vmatprep.mubr.f32.mxu0 0.0
    %301 = vmatmul.mubr.f32.gmra.mrb[0].mxu0 %v223
    %v302 = vpop.f32.mrb[0].mxu0
    %v303 = vadd.f32 %v217, %v302
    %v304 = vpop.f32.mrb[0].mxu0
    %305 = vmatprep.mubr.f32.mxu0 0.0
    %306 = vmatmul.mubr.f32.gmra.mrb[0].mxu0 %v226
    %v307 = vpop.f32.mrb[0].mxu0
    %v308 = vadd.f32 %v217, %v307
    %v309 = vpop.f32.mrb[0].mxu0
    %310 = vmatprep.mubr.f32.mxu0 0.0
    %311 = vmatmul.mubr.f32.gmra.mrb[0].mxu0 %v229
    %v312 = vpop.f32.mrb[0].mxu0
    %v313 = vadd.f32 %v217, %v312
    %v314 = vpop.f32.mrb[0].mxu0
    %315 = vdwg.mxu0
    %317 = vrot.lane.b32.xlu0 %v190, 120
    %v318 = vpop.permute.xlu0 %317
    %320 = vrot.lane.b32.xlu0 %v298, 120
    %v321 = vpop.permute.xlu0 %320
    %vm322 = vcmask 64512
    %v323 = vsel %vm322, %v190, 0
    %v325 = vsel %vm322, %v318, 0
    %v327 = vsel %vm322, %v298, 0
    %v329 = vsel %vm322, %v321, 0
    %331 = vmatprep.subr.mxu0 0.0
    %332 = vmatpush1.xpose.msra.mxu0 %v327
    %333 = vmatprep.subr.mxu0 0.0
    %334 = vmatpush1.xpose.msra.mxu0 %v329
    %335 = vmatprep.subr.mxu0 0.0
    %336 = vmatpush1.xpose.msra.mxu0 0.0
    %337 = vmatprep.subr.mxu0 0.0
    %338 = vmatpush1.xpose.msra.mxu0 0.0
    %339 = vmatprep.subr.mxu0 0.0
    %340 = vmatpush1.xpose.msra.mxu0 0.0
    %341 = vmatprep.subr.mxu0 0.0
    %342 = vmatpush1.xpose.msra.mxu0 0.0
    %343 = vmatprep.subr.mxu0 0.0
    %344 = vmatpush1.xpose.msra.mxu0 0.0
    %345 = vmatprep.subr.mxu0 0.0
    %346 = vmatpush1.xpose.msra.mxu0 0.0
    %347 = vmatprep.subr.mxu0 0.0
    %348 = vmatpush1.xpose.msra.mxu0 0.0
    %349 = vmatprep.subr.mxu0 0.0
    %350 = vmatpush1.xpose.msra.mxu0 0.0
    %351 = vmatprep.subr.mxu0 0.0
    %352 = vmatpush1.xpose.msra.mxu0 0.0
    %353 = vmatprep.subr.mxu0 0.0
    %354 = vmatpush1.xpose.msra.mxu0 0.0
    %355 = vmatprep.subr.mxu0 0.0
    %356 = vmatpush1.xpose.msra.mxu0 0.0
    %357 = vmatprep.subr.mxu0 0.0
    %358 = vmatpush1.xpose.msra.mxu0 0.0
    %359 = vmatprep.subr.mxu0 0.0
    %360 = vmatpush1.xpose.msra.mxu0 0.0
    %361 = vmatprep.subr.mxu0 0.0
    %362 = vmatpush1.xpose.msra.mxu0 0.0
    %363 = vmatprep.subr.mxu0 0.0
    %364 = vmatpush1.xpose.msra.mxu0 0.0
    %365 = vmatprep.subr.mxu0 0.0
    %366 = vmatpush1.xpose.msra.mxu0 0.0
    %367 = vmatprep.subr.mxu0 0.0
    %368 = vmatpush1.xpose.msra.mxu0 0.0
    %369 = vmatprep.subr.mxu0 0.0
    %370 = vmatpush1.xpose.msra.mxu0 0.0
    %371 = vmatprep.subr.mxu0 0.0
    %372 = vmatpush1.xpose.msra.mxu0 0.0
    %373 = vmatprep.subr.mxu0 0.0
    %374 = vmatpush1.xpose.msra.mxu0 0.0
    %375 = vmatprep.subr.mxu0 0.0
    %376 = vmatpush1.xpose.msra.mxu0 0.0
    %377 = vmatprep.subr.mxu0 0.0
    %378 = vmatpush1.xpose.msra.mxu0 0.0
    %379 = vmatprep.subr.mxu0 0.0
    %380 = vmatpush1.xpose.msra.mxu0 0.0
    %381 = vmatprep.subr.mxu0 0.0
    %382 = vmatpush1.xpose.msra.mxu0 0.0
    %383 = vmatprep.subr.mxu0 0.0
    %384 = vmatpush1.xpose.msra.mxu0 0.0
    %385 = vmatprep.subr.mxu0 0.0
    %386 = vmatpush1.xpose.msra.mxu0 0.0
    %387 = vmatprep.subr.mxu0 0.0
    %388 = vmatpush1.xpose.msra.mxu0 0.0
    %389 = vmatprep.subr.mxu0 0.0
    %390 = vmatpush1.xpose.msra.mxu0 0.0
    %391 = vmatprep.subr.mxu0 0.0
    %392 = vmatpush1.xpose.msra.mxu0 0.0
    %393 = vmatprep.subr.mxu0 0.0
    %394 = vmatpush1.xpose.msra.mxu0 0.0
    %395 = vmatprep.mubr.f32.mxu0 0.0
    %396 = vmatmul.mubr.f32.gmra.mrb[0].mxu0 %v323
    %v397 = vpop.f32.mrb[0].mxu0
    %v398 = vadd.f32 0.0, %v397
    %v399 = vpop.f32.mrb[0].mxu0
    %400 = vmatprep.mubr.f32.mxu0 0.0
    %401 = vmatmul.mubr.f32.gmra.mrb[0].mxu0 %v325
    %v402 = vpop.f32.mrb[0].mxu0
    %v403 = vadd.f32 0.0, %v402
    %v404 = vpop.f32.mrb[0].mxu0
    %405 = vdwg.mxu0
    %v406 = vmul.f32 %v398, 0.17677669
    %v407 = vmul.f32 %v403, 0.17677669
    %vm408 = vcmask 130048
    %v409 = vsel %vm408, %v406, -inf
    %410 = vmax.xlane.f32.xlu0 %v409
    %v411 = vpop.xlane.xlu0 %410
    %v412 = vsel %vm408, %v407, -inf
    %413 = vmax.xlane.f32.xlu0 %v412
    %v414 = vpop.xlane.xlu0 %413
    %v415 = vsub.f32 %v406, %v411
    %v416 = vsub.f32 %v407, %v414
    %v417 = vmul.f32 %v415, 1.442695
    %v418 = vpow.pop %v417
    %v419 = vmul.f32 %v416, 1.442695
    %v420 = vpow.pop %v419
    %v421 = vsel %vm408, %v418, 0.0
    %422 = vadd.xlane.f32.xlu0 %v421
    %v423 = vpop.xlane.xlu0 %422
    %v424 = vsel %vm408, %v420, 0.0
    %425 = vadd.xlane.f32.xlu0 %v424
    %v426 = vpop.xlane.xlu0 %425
    %v427 = vrcp.pop %v423
    %v428 = vrcp.pop %v426
    %v429 = vmul.f32 %v418, %v427
    %v430 = vmul.f32 %v420, %v428
    %431 = vrot.lane.b32.xlu0 %v298, 112
    %v432 = vpop.permute.xlu0 %431
    %433 = vrot.lane.b32.xlu0 %v321, 112
    %v434 = vpop.permute.xlu0 %433
    %v438 = vsel %vm408, %v429, 0
    %v441 = vsel %vm408, %v430, 0
    %443 = vmatprep.subr.mxu0 0.0
    %444 = vmatpush1.msra.mxu0 %v432
    %445 = vmatprep.subr.mxu0 0.0
    %446 = vmatpush1.msra.mxu0 %v434
    %447 = vmatprep.subr.mxu0 0.0
    %448 = vmatpush1.msra.mxu0 0.0
    %449 = vmatprep.subr.mxu0 0.0
    %450 = vmatpush1.msra.mxu0 0.0
    %451 = vmatprep.subr.mxu0 0.0
    %452 = vmatpush1.msra.mxu0 0.0
    %453 = vmatprep.subr.mxu0 0.0
    %454 = vmatpush1.msra.mxu0 0.0
    %455 = vmatprep.subr.mxu0 0.0
    %456 = vmatpush1.msra.mxu0 0.0
    %457 = vmatprep.subr.mxu0 0.0
    %458 = vmatpush1.msra.mxu0 0.0
    %459 = vmatprep.subr.mxu0 0.0
    %460 = vmatpush1.msra.mxu0 0.0
    %461 = vmatprep.subr.mxu0 0.0
    %462 = vmatpush1.msra.mxu0 0.0
    %463 = vmatprep.subr.mxu0 0.0
    %464 = vmatpush1.msra.mxu0 0.0
    %465 = vmatprep.subr.mxu0 0.0
    %466 = vmatpush1.msra.mxu0 0.0
    %467 = vmatprep.subr.mxu0 0.0
    %468 = vmatpush1.msra.mxu0 0.0
    %469 = vmatprep.subr.mxu0 0.0
    %470 = vmatpush1.msra.mxu0 0.0
    %471 = vmatprep.subr.mxu0 0.0
    %472 = vmatpush1.msra.mxu0 0.0
    %473 = vmatprep.subr.mxu0 0.0
    %474 = vmatpush1.msra.mxu0 0.0
    %475 = vmatprep.subr.mxu0 0.0
    %476 = vmatpush1.msra.mxu0 0.0
    %477 = vmatprep.subr.mxu0 0.0
    %478 = vmatpush1.msra.mxu0 0.0
    %479 = vmatprep.subr.mxu0 0.0
    %480 = vmatpush1.msra.mxu0 0.0
    %481 = vmatprep.subr.mxu0 0.0
    %482 = vmatpush1.msra.mxu0 0.0
    %483 = vmatprep.subr.mxu0 0.0
    %484 = vmatpush1.msra.mxu0 0.0
    %485 = vmatprep.subr.mxu0 0.0
    %486 = vmatpush1.msra.mxu0 0.0
    %487 = vmatprep.subr.mxu0 0.0
    %488 = vmatpush1.msra.mxu0 0.0
    %489 = vmatprep.subr.mxu0 0.0
    %490 = vmatpush1.msra.mxu0 0.0
    %491 = vmatprep.subr.mxu0 0.0
    %492 = vmatpush1.msra.mxu0 0.0
    %493 = vmatprep.subr.mxu0 0.0
    %494 = vmatpush1.msra.mxu0 0.0
    %495 = vmatprep.subr.mxu0 0.0
    %496 = vmatpush1.msra.mxu0 0.0
    %497 = vmatprep.subr.mxu0 0.0
    %498 = vmatpush1.msra.mxu0 0.0
    %499 = vmatprep.subr.mxu0 0.0
    %500 = vmatpush1.msra.mxu0 0.0
    %501 = vmatprep.subr.mxu0 0.0
    %502 = vmatpush1.msra.mxu0 0.0
    %503 = vmatprep.subr.mxu0 0.0
    %504 = vmatpush1.msra.mxu0 0.0
    %505 = vmatprep.subr.mxu0 0.0
    %506 = vmatpush1.msra.mxu0 0.0
    %507 = vmatprep.mubr.f32.mxu0 0.0
    %508 = vmatmul.mubr.f32.gmra.mrb[0].mxu0 %v438
    %v509 = vpop.f32.mrb[0].mxu0
    %v510 = vadd.f32 0.0, %v509
    %v511 = vpop.f32.mrb[0].mxu0
    %512 = vmatprep.mubr.f32.mxu0 0.0
    %513 = vmatmul.mubr.f32.gmra.mrb[0].mxu0 %v441
    %v514 = vpop.f32.mrb[0].mxu0
    %v515 = vadd.f32 0.0, %v514
    %v516 = vpop.f32.mrb[0].mxu0
    %517 = vdwg.mxu0
    %519 = vrot.lane.b32.xlu0 %v195, 120
    %v520 = vpop.permute.xlu0 %519
    %522 = vrot.lane.b32.xlu0 %v303, 120
    %v523 = vpop.permute.xlu0 %522
    %v524 = vsel %vm322, %v195, 0
    %v526 = vsel %vm322, %v520, 0
    %v528 = vsel %vm322, %v303, 0
    %v530 = vsel %vm322, %v523, 0
    %532 = vmatprep.subr.mxu0 0.0
    %533 = vmatpush1.xpose.msra.mxu0 %v528
    %534 = vmatprep.subr.mxu0 0.0
    %535 = vmatpush1.xpose.msra.mxu0 %v530
    %536 = vmatprep.subr.mxu0 0.0
    %537 = vmatpush1.xpose.msra.mxu0 0.0
    %538 = vmatprep.subr.mxu0 0.0
    %539 = vmatpush1.xpose.msra.mxu0 0.0
    %540 = vmatprep.subr.mxu0 0.0
    %541 = vmatpush1.xpose.msra.mxu0 0.0
    %542 = vmatprep.subr.mxu0 0.0
    %543 = vmatpush1.xpose.msra.mxu0 0.0
    %544 = vmatprep.subr.mxu0 0.0
    %545 = vmatpush1.xpose.msra.mxu0 0.0
    %546 = vmatprep.subr.mxu0 0.0
    %547 = vmatpush1.xpose.msra.mxu0 0.0
    %548 = vmatprep.subr.mxu0 0.0
    %549 = vmatpush1.xpose.msra.mxu0 0.0
    %550 = vmatprep.subr.mxu0 0.0
    %551 = vmatpush1.xpose.msra.mxu0 0.0
    %552 = vmatprep.subr.mxu0 0.0
    %553 = vmatpush1.xpose.msra.mxu0 0.0
    %554 = vmatprep.subr.mxu0 0.0
    %555 = vmatpush1.xpose.msra.mxu0 0.0
    %556 = vmatprep.subr.mxu0 0.0
    %557 = vmatpush1.xpose.msra.mxu0 0.0
    %558 = vmatprep.subr.mxu0 0.0
    %559 = vmatpush1.xpose.msra.mxu0 0.0
    %560 = vmatprep.subr.mxu0 0.0
    %561 = vmatpush1.xpose.msra.mxu0 0.0
    %562 = vmatprep.subr.mxu0 0.0
    %563 = vmatpush1.xpose.msra.mxu0 0.0
    %564 = vmatprep.subr.mxu0 0.0
    %565 = vmatpush1.xpose.msra.mxu0 0.0
    %566 = vmatprep.subr.mxu0 0.0
    %567 = vmatpush1.xpose.msra.mxu0 0.0
    %568 = vmatprep.subr.mxu0 0.0
    %569 = vmatpush1.xpose.msra.mxu0 0.0
    %570 = vmatprep.subr.mxu0 0.0
    %571 = vmatpush1.xpose.msra.mxu0 0.0
    %572 = vmatprep.subr.mxu0 0.0
    %573 = vmatpush1.xpose.msra.mxu0 0.0
    %574 = vmatprep.subr.mxu0 0.0
    %575 = vmatpush1.xpose.msra.mxu0 0.0
    %576 = vmatprep.subr.mxu0 0.0
    %577 = vmatpush1.xpose.msra.mxu0 0.0
    %578 = vmatprep.subr.mxu0 0.0
    %579 = vmatpush1.xpose.msra.mxu0 0.0
    %580 = vmatprep.subr.mxu0 0.0
    %581 = vmatpush1.xpose.msra.mxu0 0.0
    %582 = vmatprep.subr.mxu0 0.0
    %583 = vmatpush1.xpose.msra.mxu0 0.0
    %584 = vmatprep.subr.mxu0 0.0
    %585 = vmatpush1.xpose.msra.mxu0 0.0
    %586 = vmatprep.subr.mxu0 0.0
    %587 = vmatpush1.xpose.msra.mxu0 0.0
    %588 = vmatprep.subr.mxu0 0.0
    %589 = vmatpush1.xpose.msra.mxu0 0.0
    %590 = vmatprep.subr.mxu0 0.0
    %591 = vmatpush1.xpose.msra.mxu0 0.0
    %592 = vmatprep.subr.mxu0 0.0
    %593 = vmatpush1.xpose.msra.mxu0 0.0
    %594 = vmatprep.subr.mxu0 0.0
    %595 = vmatpush1.xpose.msra.mxu0 0.0
    %596 = vmatprep.mubr.f32.mxu0 0.0
    %597 = vmatmul.mubr.f32.gmra.mrb[0].mxu0 %v524
    %v598 = vpop.f32.mrb[0].mxu0
    %v599 = vadd.f32 0.0, %v598
    %v600 = vpop.f32.mrb[0].mxu0
    %601 = vmatprep.mubr.f32.mxu0 0.0
    %602 = vmatmul.mubr.f32.gmra.mrb[0].mxu0 %v526
    %v603 = vpop.f32.mrb[0].mxu0
    %v604 = vadd.f32 0.0, %v603
    %v605 = vpop.f32.mrb[0].mxu0
    %606 = vdwg.mxu0
    %v607 = vmul.f32 %v599, 0.17677669
    %v608 = vmul.f32 %v604, 0.17677669
    %v609 = vsel %vm408, %v607, -inf
    %610 = vmax.xlane.f32.xlu0 %v609
    %v611 = vpop.xlane.xlu0 %610
    %v612 = vsel %vm408, %v608, -inf
    %613 = vmax.xlane.f32.xlu0 %v612
    %v614 = vpop.xlane.xlu0 %613
    %v615 = vsub.f32 %v607, %v611
    %v616 = vsub.f32 %v608, %v614
    %v617 = vmul.f32 %v615, 1.442695
    %v618 = vpow.pop %v617
    %v619 = vmul.f32 %v616, 1.442695
    %v620 = vpow.pop %v619
    %v621 = vsel %vm408, %v618, 0.0
    %622 = vadd.xlane.f32.xlu0 %v621
    %v623 = vpop.xlane.xlu0 %622
    %v624 = vsel %vm408, %v620, 0.0
    %625 = vadd.xlane.f32.xlu0 %v624
    %v626 = vpop.xlane.xlu0 %625
    %v627 = vrcp.pop %v623
    %v628 = vrcp.pop %v626
    %v629 = vmul.f32 %v618, %v627
    %v630 = vmul.f32 %v620, %v628
    %631 = vrot.lane.b32.xlu0 %v303, 112
    %v632 = vpop.permute.xlu0 %631
    %633 = vrot.lane.b32.xlu0 %v523, 112
    %v634 = vpop.permute.xlu0 %633
    %v638 = vsel %vm408, %v629, 0
    %v641 = vsel %vm408, %v630, 0
    %643 = vmatprep.subr.mxu0 0.0
    %644 = vmatpush1.msra.mxu0 %v632
    %645 = vmatprep.subr.mxu0 0.0
    %646 = vmatpush1.msra.mxu0 %v634
    %647 = vmatprep.subr.mxu0 0.0
    %648 = vmatpush1.msra.mxu0 0.0
    %649 = vmatprep.subr.mxu0 0.0
    %650 = vmatpush1.msra.mxu0 0.0
    %651 = vmatprep.subr.mxu0 0.0
    %652 = vmatpush1.msra.mxu0 0.0
    %653 = vmatprep.subr.mxu0 0.0
    %654 = vmatpush1.msra.mxu0 0.0
    %655 = vmatprep.subr.mxu0 0.0
    %656 = vmatpush1.msra.mxu0 0.0
    %657 = vmatprep.subr.mxu0 0.0
    %658 = vmatpush1.msra.mxu0 0.0
    %659 = vmatprep.subr.mxu0 0.0
    %660 = vmatpush1.msra.mxu0 0.0
    %661 = vmatprep.subr.mxu0 0.0
    %662 = vmatpush1.msra.mxu0 0.0
    %663 = vmatprep.subr.mxu0 0.0
    %664 = vmatpush1.msra.mxu0 0.0
    %665 = vmatprep.subr.mxu0 0.0
    %666 = vmatpush1.msra.mxu0 0.0
    %667 = vmatprep.subr.mxu0 0.0
    %668 = vmatpush1.msra.mxu0 0.0
    %669 = vmatprep.subr.mxu0 0.0
    %670 = vmatpush1.msra.mxu0 0.0
    %671 = vmatprep.subr.mxu0 0.0
    %672 = vmatpush1.msra.mxu0 0.0
    %673 = vmatprep.subr.mxu0 0.0
    %674 = vmatpush1.msra.mxu0 0.0
    %675 = vmatprep.subr.mxu0 0.0
    %676 = vmatpush1.msra.mxu0 0.0
    %677 = vmatprep.subr.mxu0 0.0
    %678 = vmatpush1.msra.mxu0 0.0
    %679 = vmatprep.subr.mxu0 0.0
    %680 = vmatpush1.msra.mxu0 0.0
    %681 = vmatprep.subr.mxu0 0.0
    %682 = vmatpush1.msra.mxu0 0.0
    %683 = vmatprep.subr.mxu0 0.0
    %684 = vmatpush1.msra.mxu0 0.0
    %685 = vmatprep.subr.mxu0 0.0
    %686 = vmatpush1.msra.mxu0 0.0
    %687 = vmatprep.subr.mxu0 0.0
    %688 = vmatpush1.msra.mxu0 0.0
    %689 = vmatprep.subr.mxu0 0.0
    %690 = vmatpush1.msra.mxu0 0.0
    %691 = vmatprep.subr.mxu0 0.0
    %692 = vmatpush1.msra.mxu0 0.0
    %693 = vmatprep.subr.mxu0 0.0
    %694 = vmatpush1.msra.mxu0 0.0
    %695 = vmatprep.subr.mxu0 0.0
    %696 = vmatpush1.msra.mxu0 0.0
    %697 = vmatprep.subr.mxu0 0.0
    %698 = vmatpush1.msra.mxu0 0.0
    %699 = vmatprep.subr.mxu0 0.0
    %700 = vmatpush1.msra.mxu0 0.0
    %701 = vmatprep.subr.mxu0 0.0
    %702 = vmatpush1.msra.mxu0 0.0
    %703 = vmatprep.subr.mxu0 0.0
    %704 = vmatpush1.msra.mxu0 0.0
    %705 = vmatprep.subr.mxu0 0.0
    %706 = vmatpush1.msra.mxu0 0.0
    %707 = vmatprep.mubr.f32.mxu0 0.0
    %708 = vmatmul.mubr.f32.gmra.mrb[0].mxu0 %v638
    %v709 = vpop.f32.mrb[0].mxu0
    %v710 = vadd.f32 0.0, %v709
    %v711 = vpop.f32.mrb[0].mxu0
    %712 = vmatprep.mubr.f32.mxu0 0.0
    %713 = vmatmul.mubr.f32.gmra.mrb[0].mxu0 %v641
    %v714 = vpop.f32.mrb[0].mxu0
    %v715 = vadd.f32 0.0, %v714
    %v716 = vpop.f32.mrb[0].mxu0
    %717 = vdwg.mxu0
    %719 = vrot.lane.b32.xlu0 %v200, 120
    %v720 = vpop.permute.xlu0 %719
    %722 = vrot.lane.b32.xlu0 %v308, 120
    %v723 = vpop.permute.xlu0 %722
    %v724 = vsel %vm322, %v200, 0
    %v726 = vsel %vm322, %v720, 0
    %v728 = vsel %vm322, %v308, 0
    %v730 = vsel %vm322, %v723, 0
    %732 = vmatprep.subr.mxu0 0.0
    %733 = vmatpush1.xpose.msra.mxu0 %v728
    %734 = vmatprep.subr.mxu0 0.0
    %735 = vmatpush1.xpose.msra.mxu0 %v730
    %736 = vmatprep.subr.mxu0 0.0
    %737 = vmatpush1.xpose.msra.mxu0 0.0
    %738 = vmatprep.subr.mxu0 0.0
    %739 = vmatpush1.xpose.msra.mxu0 0.0
    %740 = vmatprep.subr.mxu0 0.0
    %741 = vmatpush1.xpose.msra.mxu0 0.0
    %742 = vmatprep.subr.mxu0 0.0
    %743 = vmatpush1.xpose.msra.mxu0 0.0
    %744 = vmatprep.subr.mxu0 0.0
    %745 = vmatpush1.xpose.msra.mxu0 0.0
    %746 = vmatprep.subr.mxu0 0.0
    %747 = vmatpush1.xpose.msra.mxu0 0.0
    %748 = vmatprep.subr.mxu0 0.0
    %749 = vmatpush1.xpose.msra.mxu0 0.0
    %750 = vmatprep.subr.mxu0 0.0
    %751 = vmatpush1.xpose.msra.mxu0 0.0
    %752 = vmatprep.subr.mxu0 0.0
    %753 = vmatpush1.xpose.msra.mxu0 0.0
    %754 = vmatprep.subr.mxu0 0.0
    %755 = vmatpush1.xpose.msra.mxu0 0.0
    %756 = vmatprep.subr.mxu0 0.0
    %757 = vmatpush1.xpose.msra.mxu0 0.0
    %758 = vmatprep.subr.mxu0 0.0
    %759 = vmatpush1.xpose.msra.mxu0 0.0
    %760 = vmatprep.subr.mxu0 0.0
    %761 = vmatpush1.xpose.msra.mxu0 0.0
    %762 = vmatprep.subr.mxu0 0.0
    %763 = vmatpush1.xpose.msra.mxu0 0.0
    %764 = vmatprep.subr.mxu0 0.0
    %765 = vmatpush1.xpose.msra.mxu0 0.0
    %766 = vmatprep.subr.mxu0 0.0
    %767 = vmatpush1.xpose.msra.mxu0 0.0
    %768 = vmatprep.subr.mxu0 0.0
    %769 = vmatpush1.xpose.msra.mxu0 0.0
    %770 = vmatprep.subr.mxu0 0.0
    %771 = vmatpush1.xpose.msra.mxu0 0.0
    %772 = vmatprep.subr.mxu0 0.0
    %773 = vmatpush1.xpose.msra.mxu0 0.0
    %774 = vmatprep.subr.mxu0 0.0
    %775 = vmatpush1.xpose.msra.mxu0 0.0
    %776 = vmatprep.subr.mxu0 0.0
    %777 = vmatpush1.xpose.msra.mxu0 0.0
    %778 = vmatprep.subr.mxu0 0.0
    %779 = vmatpush1.xpose.msra.mxu0 0.0
    %780 = vmatprep.subr.mxu0 0.0
    %781 = vmatpush1.xpose.msra.mxu0 0.0
    %782 = vmatprep.subr.mxu0 0.0
    %783 = vmatpush1.xpose.msra.mxu0 0.0
    %784 = vmatprep.subr.mxu0 0.0
    %785 = vmatpush1.xpose.msra.mxu0 0.0
    %786 = vmatprep.subr.mxu0 0.0
    %787 = vmatpush1.xpose.msra.mxu0 0.0
    %788 = vmatprep.subr.mxu0 0.0
    %789 = vmatpush1.xpose.msra.mxu0 0.0
    %790 = vmatprep.subr.mxu0 0.0
    %791 = vmatpush1.xpose.msra.mxu0 0.0
    %792 = vmatprep.subr.mxu0 0.0
    %793 = vmatpush1.xpose.msra.mxu0 0.0
    %794 = vmatprep.subr.mxu0 0.0
    %795 = vmatpush1.xpose.msra.mxu0 0.0
    %796 = vmatprep.mubr.f32.mxu0 0.0
    %797 = vmatmul.mubr.f32.gmra.mrb[0].mxu0 %v724
    %v798 = vpop.f32.mrb[0].mxu0
    %v799 = vadd.f32 0.0, %v798
    %v800 = vpop.f32.mrb[0].mxu0
    %801 = vmatprep.mubr.f32.mxu0 0.0
    %802 = vmatmul.mubr.f32.gmra.mrb[0].mxu0 %v726
    %v803 = vpop.f32.mrb[0].mxu0
    %v804 = vadd.f32 0.0, %v803
    %v805 = vpop.f32.mrb[0].mxu0
    %806 = vdwg.mxu0
    %v807 = vmul.f32 %v799, 0.17677669
    %v808 = vmul.f32 %v804, 0.17677669
    %v809 = vsel %vm408, %v807, -inf
    %810 = vmax.xlane.f32.xlu0 %v809
    %v811 = vpop.xlane.xlu0 %810
    %v812 = vsel %vm408, %v808, -inf
    %813 = vmax.xlane.f32.xlu0 %v812
    %v814 = vpop.xlane.xlu0 %813
    %v815 = vsub.f32 %v807, %v811
    %v816 = vsub.f32 %v808, %v814
    %v817 = vmul.f32 %v815, 1.442695
    %v818 = vpow.pop %v817
    %v819 = vmul.f32 %v816, 1.442695
    %v820 = vpow.pop %v819
    %v821 = vsel %vm408, %v818, 0.0
    %822 = vadd.xlane.f32.xlu0 %v821
    %v823 = vpop.xlane.xlu0 %822
    %v824 = vsel %vm408, %v820, 0.0
    %825 = vadd.xlane.f32.xlu0 %v824
    %v826 = vpop.xlane.xlu0 %825
    %v827 = vrcp.pop %v823
    %v828 = vrcp.pop %v826
    %v829 = vmul.f32 %v818, %v827
    %v830 = vmul.f32 %v820, %v828
    %831 = vrot.lane.b32.xlu0 %v308, 112
    %v832 = vpop.permute.xlu0 %831
    %833 = vrot.lane.b32.xlu0 %v723, 112
    %v834 = vpop.permute.xlu0 %833
    %v838 = vsel %vm408, %v829, 0
    %v841 = vsel %vm408, %v830, 0
    %843 = vmatprep.subr.mxu0 0.0
    %844 = vmatpush1.msra.mxu0 %v832
    %845 = vmatprep.subr.mxu0 0.0
    %846 = vmatpush1.msra.mxu0 %v834
    %847 = vmatprep.subr.mxu0 0.0
    %848 = vmatpush1.msra.mxu0 0.0
    %849 = vmatprep.subr.mxu0 0.0
    %850 = vmatpush1.msra.mxu0 0.0
    %851 = vmatprep.subr.mxu0 0.0
    %852 = vmatpush1.msra.mxu0 0.0
    %853 = vmatprep.subr.mxu0 0.0
    %854 = vmatpush1.msra.mxu0 0.0
    %855 = vmatprep.subr.mxu0 0.0
    %856 = vmatpush1.msra.mxu0 0.0
    %857 = vmatprep.subr.mxu0 0.0
    %858 = vmatpush1.msra.mxu0 0.0
    %859 = vmatprep.subr.mxu0 0.0
    %860 = vmatpush1.msra.mxu0 0.0
    %861 = vmatprep.subr.mxu0 0.0
    %862 = vmatpush1.msra.mxu0 0.0
    %863 = vmatprep.subr.mxu0 0.0
    %864 = vmatpush1.msra.mxu0 0.0
    %865 = vmatprep.subr.mxu0 0.0
    %866 = vmatpush1.msra.mxu0 0.0
    %867 = vmatprep.subr.mxu0 0.0
    %868 = vmatpush1.msra.mxu0 0.0
    %869 = vmatprep.subr.mxu0 0.0
    %870 = vmatpush1.msra.mxu0 0.0
    %871 = vmatprep.subr.mxu0 0.0
    %872 = vmatpush1.msra.mxu0 0.0
    %873 = vmatprep.subr.mxu0 0.0
    %874 = vmatpush1.msra.mxu0 0.0
    %875 = vmatprep.subr.mxu0 0.0
    %876 = vmatpush1.msra.mxu0 0.0
    %877 = vmatprep.subr.mxu0 0.0
    %878 = vmatpush1.msra.mxu0 0.0
    %879 = vmatprep.subr.mxu0 0.0
    %880 = vmatpush1.msra.mxu0 0.0
    %881 = vmatprep.subr.mxu0 0.0
    %882 = vmatpush1.msra.mxu0 0.0
    %883 = vmatprep.subr.mxu0 0.0
    %884 = vmatpush1.msra.mxu0 0.0
    %885 = vmatprep.subr.mxu0 0.0
    %886 = vmatpush1.msra.mxu0 0.0
    %887 = vmatprep.subr.mxu0 0.0
    %888 = vmatpush1.msra.mxu0 0.0
    %889 = vmatprep.subr.mxu0 0.0
    %890 = vmatpush1.msra.mxu0 0.0
    %891 = vmatprep.subr.mxu0 0.0
    %892 = vmatpush1.msra.mxu0 0.0
    %893 = vmatprep.subr.mxu0 0.0
    %894 = vmatpush1.msra.mxu0 0.0
    %895 = vmatprep.subr.mxu0 0.0
    %896 = vmatpush1.msra.mxu0 0.0
    %897 = vmatprep.subr.mxu0 0.0
    %898 = vmatpush1.msra.mxu0 0.0
    %899 = vmatprep.subr.mxu0 0.0
    %900 = vmatpush1.msra.mxu0 0.0
    %901 = vmatprep.subr.mxu0 0.0
    %902 = vmatpush1.msra.mxu0 0.0
    %903 = vmatprep.subr.mxu0 0.0
    %904 = vmatpush1.msra.mxu0 0.0
    %905 = vmatprep.subr.mxu0 0.0
    %906 = vmatpush1.msra.mxu0 0.0
    %907 = vmatprep.mubr.f32.mxu0 0.0
    %908 = vmatmul.mubr.f32.gmra.mrb[0].mxu0 %v838
    %v909 = vpop.f32.mrb[0].mxu0
    %v910 = vadd.f32 0.0, %v909
    %v911 = vpop.f32.mrb[0].mxu0
    %912 = vmatprep.mubr.f32.mxu0 0.0
    %913 = vmatmul.mubr.f32.gmra.mrb[0].mxu0 %v841
    %v914 = vpop.f32.mrb[0].mxu0
    %v915 = vadd.f32 0.0, %v914
    %v916 = vpop.f32.mrb[0].mxu0
    %917 = vdwg.mxu0
    %919 = vrot.lane.b32.xlu0 %v205, 120
    %v920 = vpop.permute.xlu0 %919
    %922 = vrot.lane.b32.xlu0 %v313, 120
    %v923 = vpop.permute.xlu0 %922
    %v924 = vsel %vm322, %v205, 0
    %v926 = vsel %vm322, %v920, 0
    %v928 = vsel %vm322, %v313, 0
    %v930 = vsel %vm322, %v923, 0
    %932 = vmatprep.subr.mxu0 0.0
    %933 = vmatpush1.xpose.msra.mxu0 %v928
    %934 = vmatprep.subr.mxu0 0.0
    %935 = vmatpush1.xpose.msra.mxu0 %v930
    %936 = vmatprep.subr.mxu0 0.0
    %937 = vmatpush1.xpose.msra.mxu0 0.0
    %938 = vmatprep.subr.mxu0 0.0
    %939 = vmatpush1.xpose.msra.mxu0 0.0
    %940 = vmatprep.subr.mxu0 0.0
    %941 = vmatpush1.xpose.msra.mxu0 0.0
    %942 = vmatprep.subr.mxu0 0.0
    %943 = vmatpush1.xpose.msra.mxu0 0.0
    %944 = vmatprep.subr.mxu0 0.0
    %945 = vmatpush1.xpose.msra.mxu0 0.0
    %946 = vmatprep.subr.mxu0 0.0
    %947 = vmatpush1.xpose.msra.mxu0 0.0
    %948 = vmatprep.subr.mxu0 0.0
    %949 = vmatpush1.xpose.msra.mxu0 0.0
    %950 = vmatprep.subr.mxu0 0.0
    %951 = vmatpush1.xpose.msra.mxu0 0.0
    %952 = vmatprep.subr.mxu0 0.0
    %953 = vmatpush1.xpose.msra.mxu0 0.0
    %954 = vmatprep.subr.mxu0 0.0
    %955 = vmatpush1.xpose.msra.mxu0 0.0
    %956 = vmatprep.subr.mxu0 0.0
    %957 = vmatpush1.xpose.msra.mxu0 0.0
    %958 = vmatprep.subr.mxu0 0.0
    %959 = vmatpush1.xpose.msra.mxu0 0.0
    %960 = vmatprep.subr.mxu0 0.0
    %961 = vmatpush1.xpose.msra.mxu0 0.0
    %962 = vmatprep.subr.mxu0 0.0
    %963 = vmatpush1.xpose.msra.mxu0 0.0
    %964 = vmatprep.subr.mxu0 0.0
    %965 = vmatpush1.xpose.msra.mxu0 0.0
    %966 = vmatprep.subr.mxu0 0.0
    %967 = vmatpush1.xpose.msra.mxu0 0.0
    %968 = vmatprep.subr.mxu0 0.0
    %969 = vmatpush1.xpose.msra.mxu0 0.0
    %970 = vmatprep.subr.mxu0 0.0
    %971 = vmatpush1.xpose.msra.mxu0 0.0
    %972 = vmatprep.subr.mxu0 0.0
    %973 = vmatpush1.xpose.msra.mxu0 0.0
    %974 = vmatprep.subr.mxu0 0.0
    %975 = vmatpush1.xpose.msra.mxu0 0.0
    %976 = vmatprep.subr.mxu0 0.0
    %977 = vmatpush1.xpose.msra.mxu0 0.0
    %978 = vmatprep.subr.mxu0 0.0
    %979 = vmatpush1.xpose.msra.mxu0 0.0
    %980 = vmatprep.subr.mxu0 0.0
    %981 = vmatpush1.xpose.msra.mxu0 0.0
    %982 = vmatprep.subr.mxu0 0.0
    %983 = vmatpush1.xpose.msra.mxu0 0.0
    %984 = vmatprep.subr.mxu0 0.0
    %985 = vmatpush1.xpose.msra.mxu0 0.0
    %986 = vmatprep.subr.mxu0 0.0
    %987 = vmatpush1.xpose.msra.mxu0 0.0
    %988 = vmatprep.subr.mxu0 0.0
    %989 = vmatpush1.xpose.msra.mxu0 0.0
    %990 = vmatprep.subr.mxu0 0.0
    %991 = vmatpush1.xpose.msra.mxu0 0.0
    %992 = vmatprep.subr.mxu0 0.0
    %993 = vmatpush1.xpose.msra.mxu0 0.0
    %994 = vmatprep.subr.mxu0 0.0
    %995 = vmatpush1.xpose.msra.mxu0 0.0
    %996 = vmatprep.mubr.f32.mxu0 0.0
    %997 = vmatmul.mubr.f32.gmra.mrb[0].mxu0 %v924
    %v998 = vpop.f32.mrb[0].mxu0
    %v999 = vadd.f32 0.0, %v998
    %v1000 = vpop.f32.mrb[0].mxu0
    %1001 = vmatprep.mubr.f32.mxu0 0.0
    %1002 = vmatmul.mubr.f32.gmra.mrb[0].mxu0 %v926
    %v1003 = vpop.f32.mrb[0].mxu0
    %v1004 = vadd.f32 0.0, %v1003
    %v1005 = vpop.f32.mrb[0].mxu0
    %1006 = vdwg.mxu0
    %v1007 = vmul.f32 %v999, 0.17677669
    %v1008 = vmul.f32 %v1004, 0.17677669
    %v1009 = vsel %vm408, %v1007, -inf
    %1010 = vmax.xlane.f32.xlu0 %v1009
    %v1011 = vpop.xlane.xlu0 %1010
    %v1012 = vsel %vm408, %v1008, -inf
    %1013 = vmax.xlane.f32.xlu0 %v1012
    %v1014 = vpop.xlane.xlu0 %1013
    %v1015 = vsub.f32 %v1007, %v1011
    %v1016 = vsub.f32 %v1008, %v1014
    %v1017 = vmul.f32 %v1015, 1.442695
    %v1018 = vpow.pop %v1017
    %v1019 = vmul.f32 %v1016, 1.442695
    %v1020 = vpow.pop %v1019
    %v1021 = vsel %vm408, %v1018, 0.0
    %1022 = vadd.xlane.f32.xlu0 %v1021
    %v1023 = vpop.xlane.xlu0 %1022
    %v1024 = vsel %vm408, %v1020, 0.0
    %1025 = vadd.xlane.f32.xlu0 %v1024
    %v1026 = vpop.xlane.xlu0 %1025
    %v1027 = vrcp.pop %v1023
    %v1028 = vrcp.pop %v1026
    %v1029 = vmul.f32 %v1018, %v1027
    %v1030 = vmul.f32 %v1020, %v1028
    %1031 = vrot.lane.b32.xlu0 %v313, 112
    %v1032 = vpop.permute.xlu0 %1031
    %1033 = vrot.lane.b32.xlu0 %v923, 112
    %v1034 = vpop.permute.xlu0 %1033
    %v1038 = vsel %vm408, %v1029, 0
    %v1041 = vsel %vm408, %v1030, 0
    %1043 = vmatprep.subr.mxu0 0.0
    %1044 = vmatpush1.msra.mxu0 %v1032
    %1045 = vmatprep.subr.mxu0 0.0
    %1046 = vmatpush1.msra.mxu0 %v1034
    %1047 = vmatprep.subr.mxu0 0.0
    %1048 = vmatpush1.msra.mxu0 0.0
    %1049 = vmatprep.subr.mxu0 0.0
    %1050 = vmatpush1.msra.mxu0 0.0
    %1051 = vmatprep.subr.mxu0 0.0
    %1052 = vmatpush1.msra.mxu0 0.0
    %1053 = vmatprep.subr.mxu0 0.0
    %1054 = vmatpush1.msra.mxu0 0.0
    %1055 = vmatprep.subr.mxu0 0.0
    %1056 = vmatpush1.msra.mxu0 0.0
    %1057 = vmatprep.subr.mxu0 0.0
    %1058 = vmatpush1.msra.mxu0 0.0
    %1059 = vmatprep.subr.mxu0 0.0
    %1060 = vmatpush1.msra.mxu0 0.0
    %1061 = vmatprep.subr.mxu0 0.0
    %1062 = vmatpush1.msra.mxu0 0.0
    %1063 = vmatprep.subr.mxu0 0.0
    %1064 = vmatpush1.msra.mxu0 0.0
    %1065 = vmatprep.subr.mxu0 0.0
    %1066 = vmatpush1.msra.mxu0 0.0
    %1067 = vmatprep.subr.mxu0 0.0
    %1068 = vmatpush1.msra.mxu0 0.0
    %1069 = vmatprep.subr.mxu0 0.0
    %1070 = vmatpush1.msra.mxu0 0.0
    %1071 = vmatprep.subr.mxu0 0.0
    %1072 = vmatpush1.msra.mxu0 0.0
    %1073 = vmatprep.subr.mxu0 0.0
    %1074 = vmatpush1.msra.mxu0 0.0
    %1075 = vmatprep.subr.mxu0 0.0
    %1076 = vmatpush1.msra.mxu0 0.0
    %1077 = vmatprep.subr.mxu0 0.0
    %1078 = vmatpush1.msra.mxu0 0.0
    %1079 = vmatprep.subr.mxu0 0.0
    %1080 = vmatpush1.msra.mxu0 0.0
    %1081 = vmatprep.subr.mxu0 0.0
    %1082 = vmatpush1.msra.mxu0 0.0
    %1083 = vmatprep.subr.mxu0 0.0
    %1084 = vmatpush1.msra.mxu0 0.0
    %1085 = vmatprep.subr.mxu0 0.0
    %1086 = vmatpush1.msra.mxu0 0.0
    %1087 = vmatprep.subr.mxu0 0.0
    %1088 = vmatpush1.msra.mxu0 0.0
    %1089 = vmatprep.subr.mxu0 0.0
    %1090 = vmatpush1.msra.mxu0 0.0
    %1091 = vmatprep.subr.mxu0 0.0
    %1092 = vmatpush1.msra.mxu0 0.0
    %1093 = vmatprep.subr.mxu0 0.0
    %1094 = vmatpush1.msra.mxu0 0.0
    %1095 = vmatprep.subr.mxu0 0.0
    %1096 = vmatpush1.msra.mxu0 0.0
    %1097 = vmatprep.subr.mxu0 0.0
    %1098 = vmatpush1.msra.mxu0 0.0
    %1099 = vmatprep.subr.mxu0 0.0
    %1100 = vmatpush1.msra.mxu0 0.0
    %1101 = vmatprep.subr.mxu0 0.0
    %1102 = vmatpush1.msra.mxu0 0.0
    %1103 = vmatprep.subr.mxu0 0.0
    %1104 = vmatpush1.msra.mxu0 0.0
    %1105 = vmatprep.subr.mxu0 0.0
    %1106 = vmatpush1.msra.mxu0 0.0
    %1107 = vmatprep.mubr.f32.mxu0 0.0
    %1108 = vmatmul.mubr.f32.gmra.mrb[0].mxu0 %v1038
    %v1109 = vpop.f32.mrb[0].mxu0
    %v1110 = vadd.f32 0.0, %v1109
    %v1111 = vpop.f32.mrb[0].mxu0
    %1112 = vmatprep.mubr.f32.mxu0 0.0
    %1113 = vmatmul.mubr.f32.gmra.mrb[0].mxu0 %v1041
    %v1114 = vpop.f32.mrb[0].mxu0
    %v1115 = vadd.f32 0.0, %v1114
    %v1116 = vpop.f32.mrb[0].mxu0
    %1117 = vdwg.mxu0
    %v1118 = vld [vmem:[#allocation2] sm:$0xff]
    %v1119 = vld [vmem:[#allocation2 + $0x8] sm:$0xff]
    %v1121 = vsel %vm322, %v515, 0
    %v1124 = vsel %vm322, %v715, 0
    %v1127 = vsel %vm322, %v915, 0
    %v1130 = vsel %vm322, %v1115, 0
    %1132 = vmatprep.subr.mxu0 0.0
    %1133 = vmatpush1.msra.mxu0 %v1119
    %1134 = vmatprep.subr.mxu0 0.0
    %1135 = vmatpush1.msra.mxu0 0.0
    %1136 = vmatprep.subr.mxu0 0.0
    %1137 = vmatpush1.msra.mxu0 0.0
    %1138 = vmatprep.subr.mxu0 0.0
    %1139 = vmatpush1.msra.mxu0 0.0
    %1140 = vmatprep.subr.mxu0 0.0
    %1141 = vmatpush1.msra.mxu0 0.0
    %1142 = vmatprep.subr.mxu0 0.0
    %1143 = vmatpush1.msra.mxu0 0.0
    %1144 = vmatprep.subr.mxu0 0.0
    %1145 = vmatpush1.msra.mxu0 0.0
    %1146 = vmatprep.subr.mxu0 0.0
    %1147 = vmatpush1.msra.mxu0 0.0
    %1148 = vmatprep.subr.mxu0 0.0
    %1149 = vmatpush1.msra.mxu0 0.0
    %1150 = vmatprep.subr.mxu0 0.0
    %1151 = vmatpush1.msra.mxu0 0.0
    %1152 = vmatprep.subr.mxu0 0.0
    %1153 = vmatpush1.msra.mxu0 0.0
    %1154 = vmatprep.subr.mxu0 0.0
    %1155 = vmatpush1.msra.mxu0 0.0
    %1156 = vmatprep.subr.mxu0 0.0
    %1157 = vmatpush1.msra.mxu0 0.0
    %1158 = vmatprep.subr.mxu0 0.0
    %1159 = vmatpush1.msra.mxu0 0.0
    %1160 = vmatprep.subr.mxu0 0.0
    %1161 = vmatpush1.msra.mxu0 0.0
    %1162 = vmatprep.subr.mxu0 0.0
    %1163 = vmatpush1.msra.mxu0 0.0
    %1164 = vmatprep.subr.mxu0 0.0
    %1165 = vmatpush1.msra.mxu0 0.0
    %1166 = vmatprep.subr.mxu0 0.0
    %1167 = vmatpush1.msra.mxu0 0.0
    %1168 = vmatprep.subr.mxu0 0.0
    %1169 = vmatpush1.msra.mxu0 0.0
    %1170 = vmatprep.subr.mxu0 0.0
    %1171 = vmatpush1.msra.mxu0 0.0
    %1172 = vmatprep.subr.mxu0 0.0
    %1173 = vmatpush1.msra.mxu0 0.0
    %1174 = vmatprep.subr.mxu0 0.0
    %1175 = vmatpush1.msra.mxu0 0.0
    %1176 = vmatprep.subr.mxu0 0.0
    %1177 = vmatpush1.msra.mxu0 0.0
    %1178 = vmatprep.subr.mxu0 0.0
    %1179 = vmatpush1.msra.mxu0 0.0
    %1180 = vmatprep.subr.mxu0 0.0
    %1181 = vmatpush1.msra.mxu0 0.0
    %1182 = vmatprep.subr.mxu0 0.0
    %1183 = vmatpush1.msra.mxu0 0.0
    %1184 = vmatprep.subr.mxu0 0.0
    %1185 = vmatpush1.msra.mxu0 0.0
    %1186 = vmatprep.subr.mxu0 0.0
    %1187 = vmatpush1.msra.mxu0 0.0
    %1188 = vmatprep.subr.mxu0 0.0
    %1189 = vmatpush1.msra.mxu0 0.0
    %1190 = vmatprep.subr.mxu0 0.0
    %1191 = vmatpush1.msra.mxu0 0.0
    %1192 = vmatprep.subr.mxu0 0.0
    %1193 = vmatpush1.msra.mxu0 0.0
    %1194 = vmatprep.subr.mxu0 0.0
    %1195 = vmatpush1.msra.mxu0 0.0
    %1196 = vmatprep.mubr.f32.mxu0 0.0
    %1197 = vmatmul.mubr.f32.gmra.mrb[0].mxu0 %v1121
    %v1198 = vpop.f32.mrb[0].mxu0
    %v1199 = vadd.f32 0.0, %v1198
    %v1200 = vpop.f32.mrb[0].mxu0
    %1201 = vmatprep.mubr.f32.mxu0 0.0
    %1202 = vmatmul.mubr.f32.gmra.mrb[0].mxu0 %v1124
    %v1203 = vpop.f32.mrb[0].mxu0
    %v1204 = vadd.f32 0.0, %v1203
    %v1205 = vpop.f32.mrb[0].mxu0
    %1206 = vmatprep.mubr.f32.mxu0 0.0
    %1207 = vmatmul.mubr.f32.gmra.mrb[0].mxu0 %v1127
    %v1208 = vpop.f32.mrb[0].mxu0
    %v1209 = vadd.f32 0.0, %v1208
    %v1210 = vpop.f32.mrb[0].mxu0
    %1211 = vmatprep.mubr.f32.mxu0 0.0
    %1212 = vmatmul.mubr.f32.gmra.mrb[0].mxu0 %v1130
    %v1213 = vpop.f32.mrb[0].mxu0
    %v1214 = vadd.f32 0.0, %v1213
    %v1215 = vpop.f32.mrb[0].mxu0
    %1216 = vdwg.mxu0
    %v1218 = vsel %vm322, %v510, 0
    %v1221 = vsel %vm322, %v710, 0
    %v1224 = vsel %vm322, %v910, 0
    %v1227 = vsel %vm322, %v1110, 0
    %1229 = vmatprep.subr.mxu0 0.0
    %1230 = vmatpush1.msra.mxu0 %v1118
    %1231 = vmatprep.subr.mxu0 0.0
    %1232 = vmatpush1.msra.mxu0 0.0
    %1233 = vmatprep.subr.mxu0 0.0
    %1234 = vmatpush1.msra.mxu0 0.0
    %1235 = vmatprep.subr.mxu0 0.0
    %1236 = vmatpush1.msra.mxu0 0.0
    %1237 = vmatprep.subr.mxu0 0.0
    %1238 = vmatpush1.msra.mxu0 0.0
    %1239 = vmatprep.subr.mxu0 0.0
    %1240 = vmatpush1.msra.mxu0 0.0
    %1241 = vmatprep.subr.mxu0 0.0
    %1242 = vmatpush1.msra.mxu0 0.0
    %1243 = vmatprep.subr.mxu0 0.0
    %1244 = vmatpush1.msra.mxu0 0.0
    %1245 = vmatprep.subr.mxu0 0.0
    %1246 = vmatpush1.msra.mxu0 0.0
    %1247 = vmatprep.subr.mxu0 0.0
    %1248 = vmatpush1.msra.mxu0 0.0
    %1249 = vmatprep.subr.mxu0 0.0
    %1250 = vmatpush1.msra.mxu0 0.0
    %1251 = vmatprep.subr.mxu0 0.0
    %1252 = vmatpush1.msra.mxu0 0.0
    %1253 = vmatprep.subr.mxu0 0.0
    %1254 = vmatpush1.msra.mxu0 0.0
    %1255 = vmatprep.subr.mxu0 0.0
    %1256 = vmatpush1.msra.mxu0 0.0
    %1257 = vmatprep.subr.mxu0 0.0
    %1258 = vmatpush1.msra.mxu0 0.0
    %1259 = vmatprep.subr.mxu0 0.0
    %1260 = vmatpush1.msra.mxu0 0.0
    %1261 = vmatprep.subr.mxu0 0.0
    %1262 = vmatpush1.msra.mxu0 0.0
    %1263 = vmatprep.subr.mxu0 0.0
    %1264 = vmatpush1.msra.mxu0 0.0
    %1265 = vmatprep.subr.mxu0 0.0
    %1266 = vmatpush1.msra.mxu0 0.0
    %1267 = vmatprep.subr.mxu0 0.0
    %1268 = vmatpush1.msra.mxu0 0.0
    %1269 = vmatprep.subr.mxu0 0.0
    %1270 = vmatpush1.msra.mxu0 0.0
    %1271 = vmatprep.subr.mxu0 0.0
    %1272 = vmatpush1.msra.mxu0 0.0
    %1273 = vmatprep.subr.mxu0 0.0
    %1274 = vmatpush1.msra.mxu0 0.0
    %1275 = vmatprep.subr.mxu0 0.0
    %1276 = vmatpush1.msra.mxu0 0.0
    %1277 = vmatprep.subr.mxu0 0.0
    %1278 = vmatpush1.msra.mxu0 0.0
    %1279 = vmatprep.subr.mxu0 0.0
    %1280 = vmatpush1.msra.mxu0 0.0
    %1281 = vmatprep.subr.mxu0 0.0
    %1282 = vmatpush1.msra.mxu0 0.0
    %1283 = vmatprep.subr.mxu0 0.0
    %1284 = vmatpush1.msra.mxu0 0.0
    %1285 = vmatprep.subr.mxu0 0.0
    %1286 = vmatpush1.msra.mxu0 0.0
    %1287 = vmatprep.subr.mxu0 0.0
    %1288 = vmatpush1.msra.mxu0 0.0
    %1289 = vmatprep.subr.mxu0 0.0
    %1290 = vmatpush1.msra.mxu0 0.0
    %1291 = vmatprep.subr.mxu0 0.0
    %1292 = vmatpush1.msra.mxu0 0.0
    %1293 = vmatprep.mubr.f32.mxu0 0.0
    %1294 = vmatmul.mubr.f32.gmra.mrb[0].mxu0 %v1218
    %v1295 = vpop.f32.mrb[0].mxu0
    %v1296 = vadd.f32 %v1199, %v1295
    %v1297 = vpop.f32.mrb[0].mxu0
    %1298 = vmatprep.mubr.f32.mxu0 0.0
    %1299 = vmatmul.mubr.f32.gmra.mrb[0].mxu0 %v1221
    %v1300 = vpop.f32.mrb[0].mxu0
    %v1301 = vadd.f32 %v1204, %v1300
    %v1302 = vpop.f32.mrb[0].mxu0
    %1303 = vmatprep.mubr.f32.mxu0 0.0
    %1304 = vmatmul.mubr.f32.gmra.mrb[0].mxu0 %v1224
    %v1305 = vpop.f32.mrb[0].mxu0
    %v1306 = vadd.f32 %v1209, %v1305
    %v1307 = vpop.f32.mrb[0].mxu0
    %1308 = vmatprep.mubr.f32.mxu0 0.0
    %1309 = vmatmul.mubr.f32.gmra.mrb[0].mxu0 %v1227
    %v1310 = vpop.f32.mrb[0].mxu0
    %v1311 = vadd.f32 %v1214, %v1310
    %v1312 = vpop.f32.mrb[0].mxu0
    %1313 = vdwg.mxu0
    %v1314 = vld [vmem:[#allocation5] sm:$0x1]
    %v1316 = vlaneseq
    %v1317 = vshrl.u32 %v1316, 7
    %v1318 = vsub.s32 0, %v1317
    %v1319 = vrot.slane %v1314, %v1318
    %v1321 = vadd.f32 %v1296, %v1319
    %v1322 = vadd.f32 %v1301, %v1319
    %v1323 = vadd.f32 %v1306, %v1319
    %v1324 = vadd.f32 %v1311, %v1319
    %v1325 = vadd.f32 %v91, %v1321
    %v1326 = vadd.f32 %v92, %v1322
    %v1327 = vadd.f32 %v93, %v1323
    %v1328 = vadd.f32 %v94, %v1324
    %v1329 = vsel %vm110, %v1325, 0.0
    %1330 = vadd.xlane.f32.xlu0 %v1329
    %v1331 = vpop.xlane.xlu0 %1330
    %v1332 = vsel %vm110, %v1326, 0.0
    %1333 = vadd.xlane.f32.xlu0 %v1332
    %v1334 = vpop.xlane.xlu0 %1333
    %v1335 = vsel %vm110, %v1327, 0.0
    %1336 = vadd.xlane.f32.xlu0 %v1335
    %v1337 = vpop.xlane.xlu0 %1336
    %v1338 = vsel %vm110, %v1328, 0.0
    %1339 = vadd.xlane.f32.xlu0 %v1338
    %v1340 = vpop.xlane.xlu0 %1339
    %v1341 = vadd.f32 %v1331, %v1334
    %v1342 = vrot.slane %v1341, 4
    %v1343 = vadd.f32 %v1341, %v1342
    %v1344 = vrot.slane %v1343, 2
    %v1345 = vadd.f32 %v1343, %v1344
    %v1346 = vrot.slane %v1345, 1
    %v1347 = vadd.f32 %v1345, %v1346
    %v1348 = vadd.f32 %v1337, %v1340
    %v1349 = vrot.slane %v1348, 4
    %v1350 = vadd.f32 %v1348, %v1349
    %v1351 = vrot.slane %v1350, 2
    %v1352 = vadd.f32 %v1350, %v1351
    %v1353 = vrot.slane %v1352, 1
    %v1354 = vadd.f32 %v1352, %v1353
    %v1355 = vmul.f32 %v1347, 0.001953125
    %v1356 = vmul.f32 %v1354, 0.001953125
    %v1357 = vsub.f32 %v1325, %v1355
    %v1358 = vsub.f32 %v1326, %v1355
    %v1359 = vsub.f32 %v1327, %v1356
    %v1360 = vsub.f32 %v1328, %v1356
    %v1361 = vmul.f32 %v1357, %v1357
    %v1362 = vmul.f32 %v1358, %v1358
    %v1363 = vmul.f32 %v1359, %v1359
    %v1364 = vmul.f32 %v1360, %v1360
    %v1365 = vsel %vm110, %v1361, 0.0
    %1366 = vadd.xlane.f32.xlu0 %v1365
    %v1367 = vpop.xlane.xlu0 %1366
    %v1368 = vsel %vm110, %v1362, 0.0
    %1369 = vadd.xlane.f32.xlu0 %v1368
    %v1370 = vpop.xlane.xlu0 %1369
    %v1371 = vsel %vm110, %v1363, 0.0
    %1372 = vadd.xlane.f32.xlu0 %v1371
    %v1373 = vpop.xlane.xlu0 %1372
    %v1374 = vsel %vm110, %v1364, 0.0
    %1375 = vadd.xlane.f32.xlu0 %v1374
    %v1376 = vpop.xlane.xlu0 %1375
    %v1377 = vadd.f32 %v1367, %v1370
    %v1378 = vrot.slane %v1377, 4
    %v1379 = vadd.f32 %v1377, %v1378
    %v1380 = vrot.slane %v1379, 2
    %v1381 = vadd.f32 %v1379, %v1380
    %v1382 = vrot.slane %v1381, 1
    %v1383 = vadd.f32 %v1381, %v1382
    %v1384 = vadd.f32 %v1373, %v1376
    %v1385 = vrot.slane %v1384, 4
    %v1386 = vadd.f32 %v1384, %v1385
    %v1387 = vrot.slane %v1386, 2
    %v1388 = vadd.f32 %v1386, %v1387
    %v1389 = vrot.slane %v1388, 1
    %v1390 = vadd.f32 %v1388, %v1389
    %v1391 = vmul.f32 %v1383, 0.001953125
    %v1392 = vmul.f32 %v1390, 0.001953125
    %v1393 = vadd.f32 %v1391, 1e-05
    %v1394 = vadd.f32 %v1392, 1e-05
    %v1395 = vrsqrt.pop %v1393
    %v1396 = vrsqrt.pop %v1394
    %v1397 = vmul.f32 %v1357, %v1395
    %v1398 = vmul.f32 %v1358, %v1395
    %v1399 = vmul.f32 %v1359, %v1396
    %v1400 = vmul.f32 %v1360, %v1396
    %v1401 = vld [vmem:[%s8] sm:$0xff]
    %v1402 = vld [vmem:[%s8 + $0x8] sm:$0xff]
    %v1403 = vld [vmem:[%s8 + $0x10] sm:$0xff]
    %v1404 = vld [vmem:[%s8 + $0x18] sm:$0xff]
    %v1405 = vld [vmem:[#allocation7] sm:$0x1]
    %v1407 = vlaneseq
    %v1408 = vshrl.u32 %v1407, 7
    %v1409 = vsub.s32 0, %v1408
    %v1410 = vrot.slane %v1405, %v1409
    %v1413 = vsel %vm110, %v1397, 0
    %v1416 = vsel %vm110, %v1398, 0
    %v1419 = vsel %vm110, %v1399, 0
    %v1422 = vsel %vm110, %v1400, 0
    %1424 = vmatprep.subr.mxu0 0.0
    %1425 = vmatpush1.msra.mxu0 %v1401
    %1426 = vmatprep.subr.mxu0 0.0
    %1427 = vmatpush1.msra.mxu0 %v1402
    %1428 = vmatprep.subr.mxu0 0.0
    %1429 = vmatpush1.msra.mxu0 %v1403
    %1430 = vmatprep.subr.mxu0 0.0
    %1431 = vmatpush1.msra.mxu0 %v1404
    %1432 = vmatprep.subr.mxu0 0.0
    %1433 = vmatpush1.msra.mxu0 0.0
    %1434 = vmatprep.subr.mxu0 0.0
    %1435 = vmatpush1.msra.mxu0 0.0
    %1436 = vmatprep.subr.mxu0 0.0
    %1437 = vmatpush1.msra.mxu0 0.0
    %1438 = vmatprep.subr.mxu0 0.0
    %1439 = vmatpush1.msra.mxu0 0.0
    %1440 = vmatprep.subr.mxu0 0.0
    %1441 = vmatpush1.msra.mxu0 0.0
    %1442 = vmatprep.subr.mxu0 0.0
    %1443 = vmatpush1.msra.mxu0 0.0
    %1444 = vmatprep.subr.mxu0 0.0
    %1445 = vmatpush1.msra.mxu0 0.0
    %1446 = vmatprep.subr.mxu0 0.0
    %1447 = vmatpush1.msra.mxu0 0.0
    %1448 = vmatprep.subr.mxu0 0.0
    %1449 = vmatpush1.msra.mxu0 0.0
    %1450 = vmatprep.subr.mxu0 0.0
    %1451 = vmatpush1.msra.mxu0 0.0
    %1452 = vmatprep.subr.mxu0 0.0
    %1453 = vmatpush1.msra.mxu0 0.0
    %1454 = vmatprep.subr.mxu0 0.0
    %1455 = vmatpush1.msra.mxu0 0.0
    %1456 = vmatprep.subr.mxu0 0.0
    %1457 = vmatpush1.msra.mxu0 0.0
    %1458 = vmatprep.subr.mxu0 0.0
    %1459 = vmatpush1.msra.mxu0 0.0
    %1460 = vmatprep.subr.mxu0 0.0
    %1461 = vmatpush1.msra.mxu0 0.0
    %1462 = vmatprep.subr.mxu0 0.0
    %1463 = vmatpush1.msra.mxu0 0.0
    %1464 = vmatprep.subr.mxu0 0.0
    %1465 = vmatpush1.msra.mxu0 0.0
    %1466 = vmatprep.subr.mxu0 0.0
    %1467 = vmatpush1.msra.mxu0 0.0
    %1468 = vmatprep.subr.mxu0 0.0
    %1469 = vmatpush1.msra.mxu0 0.0
    %1470 = vmatprep.subr.mxu0 0.0
    %1471 = vmatpush1.msra.mxu0 0.0
    %1472 = vmatprep.subr.mxu0 0.0
    %1473 = vmatpush1.msra.mxu0 0.0
    %1474 = vmatprep.subr.mxu0 0.0
    %1475 = vmatpush1.msra.mxu0 0.0
    %1476 = vmatprep.subr.mxu0 0.0
    %1477 = vmatpush1.msra.mxu0 0.0
    %1478 = vmatprep.subr.mxu0 0.0
    %1479 = vmatpush1.msra.mxu0 0.0
    %1480 = vmatprep.subr.mxu0 0.0
    %1481 = vmatpush1.msra.mxu0 0.0
    %1482 = vmatprep.subr.mxu0 0.0
    %1483 = vmatpush1.msra.mxu0 0.0
    %1484 = vmatprep.subr.mxu0 0.0
    %1485 = vmatpush1.msra.mxu0 0.0
    %1486 = vmatprep.subr.mxu0 0.0
    %1487 = vmatpush1.msra.mxu0 0.0
    %1488 = vmatprep.mubr.f32.mxu0 0.0
    %1489 = vmatmul.mubr.f32.gmra.mrb[0].mxu0 %v1413
    %v1490 = vpop.f32.mrb[0].mxu0
    %v1491 = vadd.f32 %v1410, %v1490
    %v1492 = vpop.f32.mrb[0].mxu0
    %1493 = vmatprep.mubr.f32.mxu0 0.0
    %1494 = vmatmul.mubr.f32.gmra.mrb[0].mxu0 %v1416
    %v1495 = vpop.f32.mrb[0].mxu0
    %v1496 = vadd.f32 %v1410, %v1495
    %v1497 = vpop.f32.mrb[0].mxu0
    %1498 = vmatprep.mubr.f32.mxu0 0.0
    %1499 = vmatmul.mubr.f32.gmra.mrb[0].mxu0 %v1419
    %v1500 = vpop.f32.mrb[0].mxu0
    %v1501 = vadd.f32 %v1410, %v1500
    %v1502 = vpop.f32.mrb[0].mxu0
    %1503 = vmatprep.mubr.f32.mxu0 0.0
    %1504 = vmatmul.mubr.f32.gmra.mrb[0].mxu0 %v1422
    %v1505 = vpop.f32.mrb[0].mxu0
    %v1506 = vadd.f32 %v1410, %v1505
    %v1507 = vpop.f32.mrb[0].mxu0
    %1508 = vdwg.mxu0
    %v1509 = vmul.f32 %v1491, 0.5
    %v1510 = vmul.f32 %v1496, 0.5
    %v1511 = vmul.f32 %v1501, 0.5
    %v1512 = vmul.f32 %v1506, 0.5
    %v1513 = vmul.f32 %v1491, 0.044715
    %v1514 = vmul.f32 %v1496, 0.044715
    %v1515 = vmul.f32 %v1501, 0.044715
    %v1516 = vmul.f32 %v1506, 0.044715
    %v1517 = vmul.f32 %v1513, %v1491
    %v1518 = vmul.f32 %v1514, %v1496
    %v1519 = vmul.f32 %v1515, %v1501
    %v1520 = vmul.f32 %v1516, %v1506
    %v1521 = vmul.f32 %v1517, %v1491
    %v1522 = vmul.f32 %v1518, %v1496
    %v1523 = vmul.f32 %v1519, %v1501
    %v1524 = vmul.f32 %v1520, %v1506
    %v1525 = vadd.f32 %v1491, %v1521
    %v1526 = vadd.f32 %v1496, %v1522
    %v1527 = vadd.f32 %v1501, %v1523
    %v1528 = vadd.f32 %v1506, %v1524
    %v1529 = vmul.f32 %v1525, 0.7978846
    %v1530 = vmul.f32 %v1526, 0.7978846
    %v1531 = vmul.f32 %v1527, 0.7978846
    %v1532 = vmul.f32 %v1528, 0.7978846
    %v1533 = vtanh.pop %v1529
    %v1534 = vtanh.pop %v1530
    %v1535 = vtanh.pop %v1531
    %v1536 = vtanh.pop %v1532
    %v1537 = vadd.f32 %v1533, 1.0
    %v1538 = vadd.f32 %v1534, 1.0
    %v1539 = vadd.f32 %v1535, 1.0
    %v1540 = vadd.f32 %v1536, 1.0
    %v1541 = vmul.f32 %v1509, %v1537
    %v1542 = vmul.f32 %v1510, %v1538
    %v1543 = vmul.f32 %v1511, %v1539
    %v1544 = vmul.f32 %v1512, %v1540
    %v1545 = vld [vmem:[%s10] sm:$0xff]
    %v1546 = vld [vmem:[%s10 + $0x8] sm:$0xff]
    %v1547 = vld [vmem:[%s10 + $0x10] sm:$0xff]
    %v1548 = vld [vmem:[%s10 + $0x18] sm:$0xff]
    %v1549 = vld [vmem:[%s10 + $0x20] sm:$0xff]
    %v1550 = vld [vmem:[%s10 + $0x28] sm:$0xff]
    %v1551 = vld [vmem:[%s10 + $0x30] sm:$0xff]
    %v1552 = vld [vmem:[%s10 + $0x38] sm:$0xff]
    %v1553 = vld [vmem:[#allocation8] sm:$0x1]
    %v1555 = vlaneseq
    %v1556 = vshrl.u32 %v1555, 7
    %v1557 = vsub.s32 0, %v1556
    %v1558 = vrot.slane %v1553, %v1557
    %vm1560 = vcmask 523264
    %v1562 = vsel %vm1560, %v1541, 0
    %v1565 = vsel %vm1560, %v1542, 0
    %v1568 = vsel %vm1560, %v1543, 0
    %v1571 = vsel %vm1560, %v1544, 0
    %1573 = vmatprep.subr.mxu0 0.0
    %1574 = vmatpush1.msra.mxu0 %v1545
    %1575 = vmatprep.subr.mxu0 0.0
    %1576 = vmatpush1.msra.mxu0 %v1546
    %1577 = vmatprep.subr.mxu0 0.0
    %1578 = vmatpush1.msra.mxu0 %v1547
    %1579 = vmatprep.subr.mxu0 0.0
    %1580 = vmatpush1.msra.mxu0 %v1548
    %1581 = vmatprep.subr.mxu0 0.0
    %1582 = vmatpush1.msra.mxu0 %v1549
    %1583 = vmatprep.subr.mxu0 0.0
    %1584 = vmatpush1.msra.mxu0 %v1550
    %1585 = vmatprep.subr.mxu0 0.0
    %1586 = vmatpush1.msra.mxu0 %v1551
    %1587 = vmatprep.subr.mxu0 0.0
    %1588 = vmatpush1.msra.mxu0 %v1552
    %1589 = vmatprep.subr.mxu0 0.0
    %1590 = vmatpush1.msra.mxu0 0.0
    %1591 = vmatprep.subr.mxu0 0.0
    %1592 = vmatpush1.msra.mxu0 0.0
    %1593 = vmatprep.subr.mxu0 0.0
    %1594 = vmatpush1.msra.mxu0 0.0
    %1595 = vmatprep.subr.mxu0 0.0
    %1596 = vmatpush1.msra.mxu0 0.0
    %1597 = vmatprep.subr.mxu0 0.0
    %1598 = vmatpush1.msra.mxu0 0.0
    %1599 = vmatprep.subr.mxu0 0.0
    %1600 = vmatpush1.msra.mxu0 0.0
    %1601 = vmatprep.subr.mxu0 0.0
    %1602 = vmatpush1.msra.mxu0 0.0
    %1603 = vmatprep.subr.mxu0 0.0
    %1604 = vmatpush1.msra.mxu0 0.0
    %1605 = vmatprep.subr.mxu0 0.0
    %1606 = vmatpush1.msra.mxu0 0.0
    %1607 = vmatprep.subr.mxu0 0.0
    %1608 = vmatpush1.msra.mxu0 0.0
    %1609 = vmatprep.subr.mxu0 0.0
    %1610 = vmatpush1.msra.mxu0 0.0
    %1611 = vmatprep.subr.mxu0 0.0
    %1612 = vmatpush1.msra.mxu0 0.0
    %1613 = vmatprep.subr.mxu0 0.0
    %1614 = vmatpush1.msra.mxu0 0.0
    %1615 = vmatprep.subr.mxu0 0.0
    %1616 = vmatpush1.msra.mxu0 0.0
    %1617 = vmatprep.subr.mxu0 0.0
    %1618 = vmatpush1.msra.mxu0 0.0
    %1619 = vmatprep.subr.mxu0 0.0
    %1620 = vmatpush1.msra.mxu0 0.0
    %1621 = vmatprep.subr.mxu0 0.0
    %1622 = vmatpush1.msra.mxu0 0.0
    %1623 = vmatprep.subr.mxu0 0.0
    %1624 = vmatpush1.msra.mxu0 0.0
    %1625 = vmatprep.subr.mxu0 0.0
    %1626 = vmatpush1.msra.mxu0 0.0
    %1627 = vmatprep.subr.mxu0 0.0
    %1628 = vmatpush1.msra.mxu0 0.0
    %1629 = vmatprep.subr.mxu0 0.0
    %1630 = vmatpush1.msra.mxu0 0.0
    %1631 = vmatprep.subr.mxu0 0.0
    %1632 = vmatpush1.msra.mxu0 0.0
    %1633 = vmatprep.subr.mxu0 0.0
    %1634 = vmatpush1.msra.mxu0 0.0
    %1635 = vmatprep.subr.mxu0 0.0
    %1636 = vmatpush1.msra.mxu0 0.0
    %1637 = vmatprep.mubr.f32.mxu0 0.0
    %1638 = vmatmul.mubr.f32.gmra.mrb[0].mxu0 %v1562
    %v1639 = vpop.f32.mrb[0].mxu0
    %v1640 = vadd.f32 %v1558, %v1639
    %v1641 = vpop.f32.mrb[0].mxu0
    %1642 = vmatprep.mubr.f32.mxu0 0.0
    %1643 = vmatmul.mubr.f32.gmra.mrb[0].mxu0 %v1565
    %v1644 = vpop.f32.mrb[0].mxu0
    %v1645 = vadd.f32 %v1558, %v1644
    %v1646 = vpop.f32.mrb[0].mxu0
    %1647 = vmatprep.mubr.f32.mxu0 0.0
    %1648 = vmatmul.mubr.f32.gmra.mrb[0].mxu0 %v1568
    %v1649 = vpop.f32.mrb[0].mxu0
    %v1650 = vadd.f32 %v1558, %v1649
    %v1651 = vpop.f32.mrb[0].mxu0
    %1652 = vmatprep.mubr.f32.mxu0 0.0
    %1653 = vmatmul.mubr.f32.gmra.mrb[0].mxu0 %v1571
    %v1654 = vpop.f32.mrb[0].mxu0
    %v1655 = vadd.f32 %v1558, %v1654
    %v1656 = vpop.f32.mrb[0].mxu0
    %1657 = vdwg.mxu0
    %v1658 = vadd.f32 %v1397, %v1640
    %v1659 = vadd.f32 %v1398, %v1645
    %v1660 = vadd.f32 %v1399, %v1650
    %v1661 = vadd.f32 %v1400, %v1655
    %v1662 = vsel %vm110, %v1658, 0.0
    %1663 = vadd.xlane.f32.xlu0 %v1662
    %v1664 = vpop.xlane.xlu0 %1663
    %v1665 = vsel %vm110, %v1659, 0.0
    %1666 = vadd.xlane.f32.xlu0 %v1665
    %v1667 = vpop.xlane.xlu0 %1666
    %v1668 = vsel %vm110, %v1660, 0.0
    %1669 = vadd.xlane.f32.xlu0 %v1668
    %v1670 = vpop.xlane.xlu0 %1669
    %v1671 = vsel %vm110, %v1661, 0.0
    %1672 = vadd.xlane.f32.xlu0 %v1671
    %v1673 = vpop.xlane.xlu0 %1672
    %v1674 = vadd.f32 %v1664, %v1667
    %v1675 = vrot.slane %v1674, 4
    %v1676 = vadd.f32 %v1674, %v1675
    %v1677 = vrot.slane %v1676, 2
    %v1678 = vadd.f32 %v1676, %v1677
    %v1679 = vrot.slane %v1678, 1
    %v1680 = vadd.f32 %v1678, %v1679
    %v1681 = vadd.f32 %v1670, %v1673
    %v1682 = vrot.slane %v1681, 4
    %v1683 = vadd.f32 %v1681, %v1682
    %v1684 = vrot.slane %v1683, 2
    %v1685 = vadd.f32 %v1683, %v1684
    %v1686 = vrot.slane %v1685, 1
    %v1687 = vadd.f32 %v1685, %v1686
    %v1688 = vmul.f32 %v1680, 0.001953125
    %v1689 = vmul.f32 %v1687, 0.001953125
    %v1690 = vsub.f32 %v1658, %v1688
    %v1691 = vsub.f32 %v1659, %v1688
    %v1692 = vsub.f32 %v1660, %v1689
    %v1693 = vsub.f32 %v1661, %v1689
    %v1694 = vmul.f32 %v1690, %v1690
    %v1695 = vmul.f32 %v1691, %v1691
    %v1696 = vmul.f32 %v1692, %v1692
    %v1697 = vmul.f32 %v1693, %v1693
    %v1698 = vsel %vm110, %v1694, 0.0
    %1699 = vadd.xlane.f32.xlu0 %v1698
    %v1700 = vpop.xlane.xlu0 %1699
    %v1701 = vsel %vm110, %v1695, 0.0
    %1702 = vadd.xlane.f32.xlu0 %v1701
    %v1703 = vpop.xlane.xlu0 %1702
    %v1704 = vsel %vm110, %v1696, 0.0
    %1705 = vadd.xlane.f32.xlu0 %v1704
    %v1706 = vpop.xlane.xlu0 %1705
    %v1707 = vsel %vm110, %v1697, 0.0
    %1708 = vadd.xlane.f32.xlu0 %v1707
    %v1709 = vpop.xlane.xlu0 %1708
    %v1710 = vadd.f32 %v1700, %v1703
    %v1711 = vrot.slane %v1710, 4
    %v1712 = vadd.f32 %v1710, %v1711
    %v1713 = vrot.slane %v1712, 2
    %v1714 = vadd.f32 %v1712, %v1713
    %v1715 = vrot.slane %v1714, 1
    %v1716 = vadd.f32 %v1714, %v1715
    %v1717 = vadd.f32 %v1706, %v1709
    %v1718 = vrot.slane %v1717, 4
    %v1719 = vadd.f32 %v1717, %v1718
    %v1720 = vrot.slane %v1719, 2
    %v1721 = vadd.f32 %v1719, %v1720
    %v1722 = vrot.slane %v1721, 1
    %v1723 = vadd.f32 %v1721, %v1722
    %v1724 = vmul.f32 %v1716, 0.001953125
    %v1725 = vmul.f32 %v1723, 0.001953125
    %v1726 = vadd.f32 %v1724, 1e-05
    %v1727 = vadd.f32 %v1725, 1e-05
    %v1728 = vrsqrt.pop %v1726
    %v1729 = vrsqrt.pop %v1727
    %v1730 = vmul.f32 %v1690, %v1728
    %v1731 = vmul.f32 %v1691, %v1728
    %v1732 = vmul.f32 %v1692, %v1729
    %v1733 = vmul.f32 %v1693, %v1729
    %v1734 = vadd.f32 %v1730, %v91
    %v1735 = vadd.f32 %v1731, %v92
    %v1736 = vadd.f32 %v1732, %v93
    %v1737 = vadd.f32 %v1733, %v94
    %1738 = vst.msk [vmem:[#allocation10] sm:$0xff] %vm110, %v1734
    %1739 = vst.msk [vmem:[#allocation10 + $0x8] sm:$0xff] %vm110, %v1735
    %1740 = vst.msk [vmem:[#allocation10 + $0x10] sm:$0xff] %vm110, %v1736
    %1741 = vst.msk [vmem:[#allocation10 + $0x18] sm:$0xff] %vm110, %v1737
    // Predicated region
    $region66: #{cross_modal_forward.1} parent=1 // pred_check
      _
    $region67: #{cross_modal_forward.1} parent=1 // pred_check_branch
      %1743 = sbr.rel (0) target = $region69
    $region68: #{cross_modal_forward.1} parent=1 // pred_region
      %s1745 = ssub.s32 512, 512
      %1746 = vsyncadd [#allocation4], %s1745
      %s1747 = sshll.u32 [#allocation10], 4
      %s1748 = int_to_ptr.vmem [resolvable:$true] %s1747
      %1753 = dma.vmem_to_hbm [thread:$0]  %s1748, 512, %s12, [#allocation4], 128, 128, 8
    $region69: #{cross_modal_forward.1} parent=1 // pred_fallthru
      _
    // Predicated region
    $region70: #{cross_modal_forward.1} parent=1 // pred_check
      _
    $region71: #{cross_modal_forward.1} parent=1 // pred_check_branch
      %1755 = sbr.rel (0) target = $region73
    $region72: #{cross_modal_forward.1} parent=1 // pred_region
      %1756 = dma.done [#allocation4], 512
    $region73: #{cross_modal_forward.1} parent=1 // pred_fallthru
      _
    %1757 = vsyncpa [#allocation3], 1
    %1758 = vsyncpa [#allocation6], 1
    %1759 = vsyncpa [#allocation9], 1
    %1760 = vsyncpa [#allocation4], 1

</llo_original>
